<compile_context>
chip_gen: v7x
topology: tpu7x:2x2x1
jax: 0.10.0
libtpu: 0.0.40
codegen_flags: <defaults>
</compile_context>

<pallas_src>
import functools

import jax
import jax.numpy as jnp
from jax.experimental import pallas as pl
from jax.experimental.pallas import tpu as pltpu

LANE = 128
# MXU operand dtype (f32 accumulation). Set to jnp.float32 for bit-closer-to-PyTorch math.
MXU_DTYPE = jnp.bfloat16


# ----------------------------- in-kernel helpers -----------------------------

def _layernorm(x, g, b, eps=1e-5):
    mu = jnp.mean(x, axis=-1, keepdims=True)
    var = jnp.mean((x - mu) ** 2, axis=-1, keepdims=True)
    return (x - mu) * jax.lax.rsqrt(var + eps) * g + b


# --------------------------- fused forward kernel ----------------------------

def _fused_forward_kernel(
        emb_ref, bias_ref,
        wqkv_ref, bqkv_ref, wo_ref, bo_ref, ln1g_ref, ln1b_ref,
        w1_ref, b1_ref, w2_ref, b2_ref, ln2g_ref, ln2b_ref,
        lnfg_ref, lnfb_ref, wi_ref, bi_ref, we_ref, be_ref,
        intent_ref, entity_ref,
        h_ref,
        *, batch, seq, nhead):
    """One grid step == one encoder layer. Hidden state lives in h_ref (VMEM)."""
    layer = pl.program_id(0)
    n, d = h_ref.shape                      # n = batch * seq
    dh = d // nhead
    scale = 1.0 / (dh ** 0.5)
    cdt = wqkv_ref.dtype                    # MXU operand dtype (bf16)

    @pl.when(layer == 0)
    def _():
        h_ref[...] = emb_ref[...].astype(jnp.float32)

    x = h_ref[...]                                           # (N, D) f32 residual stream

    # ---- multi-head self-attention (post-norm, PyTorch norm_first=False) ----
    qkv = jnp.dot(x.astype(cdt), wqkv_ref[...],
                  preferred_element_type=jnp.float32) + bqkv_ref[...]   # (N, 3D)
    q = qkv[:, 0:d].reshape(batch, seq, d)
    k = qkv[:, d:2 * d].reshape(batch, seq, d)
    v = qkv[:, 2 * d:3 * d].reshape(batch, seq, d)

    # additive key-padding bias, broadcast ONCE (not per head)
    bias_b = jnp.broadcast_to(bias_ref[...], (batch, seq, seq))          # (B, S, S)

    heads = []
    for hh in range(nhead):                  # static unrolled (small nhead)
        sl = slice(hh * dh, (hh + 1) * dh)
        s = jnp.einsum('bqc,bkc->bqk',
                       q[:, :, sl].astype(cdt), k[:, :, sl].astype(cdt),
                       preferred_element_type=jnp.float32) * scale + bias_b
        s = s - jnp.max(s, axis=-1, keepdims=True)
        p = jnp.exp(s)
        p = p * pl.reciprocal(jnp.sum(p, axis=-1, keepdims=True), approx=True)
        heads.append(jnp.einsum('bqk,bkc->bqc',
                                p.astype(cdt), v[:, :, sl].astype(cdt),
                                preferred_element_type=jnp.float32))     # (B, S, dh)
    # concat heads, single K=D output projection for the whole batch
    ctx = jnp.concatenate(heads, axis=-1).reshape(n, d)                  # (N, D)
    attn = jnp.dot(ctx.astype(cdt), wo_ref[...],
                   preferred_element_type=jnp.float32) + bo_ref[...]

    h1 = _layernorm(x + attn, ln1g_ref[...], ln1b_ref[...])

    # ---- feed-forward: relu(h1 @ W1 + b1) @ W2 + b2 ----
    ff = jnp.maximum(jnp.dot(h1.astype(cdt), w1_ref[...],
                             preferred_element_type=jnp.float32) + b1_ref[...], 0.0)
    ff = jnp.dot(ff.astype(cdt), w2_ref[...],
                 preferred_element_type=jnp.float32) + b2_ref[...]

    h2 = _layernorm(h1 + ff, ln2g_ref[...], ln2b_ref[...])
    h_ref[...] = h2                                        # carry to next layer

    # ---- after the last layer: final LayerNorm + both heads ----
    @pl.when(layer == pl.num_programs(0) - 1)
    def _():
        xf = _layernorm(h2, lnfg_ref[...], lnfb_ref[...])                # (N, D)
        entity_ref[...] = (jnp.dot(xf.astype(cdt), we_ref[...],
                                   preferred_element_type=jnp.float32)
                           + be_ref[...]).astype(entity_ref.dtype)
        # intent head uses sequence position 0 of each batch element
        rows = [xf[b * seq:b * seq + 1, :] for b in range(batch)]
        x0 = jnp.concatenate(rows, axis=0) if batch > 1 else rows[0]     # (B, D)
        intent_ref[...] = (jnp.dot(x0.astype(cdt), wi_ref[...],
                                   preferred_element_type=jnp.float32)
                           + bi_ref[...]).astype(intent_ref.dtype)


# ------------------------------ full forward ----------------------------------

def embedding_transformer_forward(tokens, params, *, nhead, pad_token_id=0):
    B, S = tokens.shape
    D = params["tok_emb"].shape[1]
    L = params["wqkv"].shape[0]
    F = params["w1"].shape[2]
    I = params["wi"].shape[1]
    E = params["we"].shape[1]
    N = B * S
    Ipad = ((I + LANE - 1) // LANE) * LANE
    Epad = ((E + LANE - 1) // LANE) * LANE

    # glue in plain JAX: embedding gather + positional embedding + padding-mask bias
    emb = (params["tok_emb"][tokens] +
           params["pos_emb"][jnp.arange(S)][None, :, :]).astype(jnp.float32)
    emb = emb.reshape(N, D)
    mask_bias = jnp.where(tokens == pad_token_id, -1e9, 0.0).astype(
        jnp.float32).reshape(B, 1, S)

    # lane-dense (zero-padded) head weights; logits sliced back after the kernel
    wi_p = jnp.zeros((D, Ipad), MXU_DTYPE).at[:, :I].set(params["wi"].astype(MXU_DTYPE))
    bi_p = jnp.zeros((1, Ipad), jnp.float32).at[:, :I].set(params["bi"].reshape(1, I))
    we_p = jnp.zeros((D, Epad), MXU_DTYPE).at[:, :E].set(params["we"].astype(MXU_DTYPE))
    be_p = jnp.zeros((1, Epad), jnp.float32).at[:, :E].set(params["be"].reshape(1, E))

    def const(shape):                       # same full block every grid step
        nd = len(shape)
        return pl.BlockSpec(shape, lambda l, _nd=nd: (0,) * _nd)

    def per_layer(tail):                    # (L, *tail) stacked weights, layer l per step
        nd = len(tail)
        return pl.BlockSpec((None,) + tail, lambda l, _nd=nd: (l,) + (0,) * _nd)

    kernel = functools.partial(_fused_forward_kernel, batch=B, seq=S, nhead=nhead)

    intent_p, entity_p = pl.pallas_call(
        kernel,
        out_shape=(jax.ShapeDtypeStruct((B, Ipad), jnp.float32),
                   jax.ShapeDtypeStruct((N, Epad), jnp.float32)),
        grid_spec=pltpu.PrefetchScalarGridSpec(
            num_scalar_prefetch=0,
            grid=(L,),
            in_specs=[
                const((N, D)),                       # embedded input
                const((B, 1, S)),                    # key-padding bias
                per_layer((D, 3 * D)), per_layer((1, 3 * D)),   # wqkv, bqkv
                per_layer((D, D)),     per_layer((1, D)),       # wo, bo
                per_layer((1, D)),     per_layer((1, D)),       # ln1 g, b
                per_layer((D, F)),     per_layer((1, F)),       # w1, b1
                per_layer((F, D)),     per_layer((1, D)),       # w2, b2
                per_layer((1, D)),     per_layer((1, D)),       # ln2 g, b
                const((1, D)), const((1, D)),                   # final LN g, b
                const((D, Ipad)), const((1, Ipad)),             # intent head
                const((D, Epad)), const((1, Epad)),             # entity head
            ],
            out_specs=(pl.BlockSpec((B, Ipad), lambda l: (0, 0)),
                       pl.BlockSpec((N, Epad), lambda l: (0, 0))),
            scratch_shapes=[pltpu.VMEM((N, D), jnp.float32)],   # resident hidden state
        ),
        compiler_params=pltpu.CompilerParams(
            dimension_semantics=("arbitrary",)),     # layer axis carries state
    )(emb, mask_bias,
      params["wqkv"], params["bqkv"], params["wo"], params["bo"],
      params["ln1_g"], params["ln1_b"],
      params["w1"], params["b1"], params["w2"], params["b2"],
      params["ln2_g"], params["ln2_b"],
      params["lnf_g"], params["lnf_b"],
      wi_p, bi_p, we_p, be_p)

    intent = intent_p[:, :I]                            # (B, intent_class_num)
    entity = entity_p.reshape(B, S, Epad)[:, :, :E]     # (B, S, entity_class_num)
    return intent, entity


# ------------------------------ parameter init --------------------------------

def init_params(key, *, vocab_size, seq_len, d_model, nhead, num_layers,
                dim_feedforward, intent_class_num, entity_class_num):
    ks = jax.random.split(key, 9)

    def nrm(k, shape, scale=0.02):
        return jax.random.normal(k, shape, jnp.float32) * scale

    L, D, F = num_layers, d_model, dim_feedforward
    params = {
        "tok_emb": nrm(ks[0], (vocab_size, D)),
        "pos_emb": nrm(ks[1], (seq_len, D)),
        "lnf_g": jnp.ones((1, D), jnp.float32),
        "lnf_b": jnp.zeros((1, D), jnp.float32),
        "wi": nrm(ks[2], (D, intent_class_num)),
        "bi": jnp.zeros((intent_class_num,), jnp.float32),
        "we": nrm(ks[3], (D, entity_class_num)),
        "be": jnp.zeros((entity_class_num,), jnp.float32),
        # per-layer weights stacked along a leading L axis; matmul weights in MXU_DTYPE
        "wqkv": nrm(ks[4], (L, D, 3 * D)).astype(MXU_DTYPE),
        "bqkv": jnp.zeros((L, 1, 3 * D), jnp.float32),
        "wo": nrm(ks[5], (L, D, D)).astype(MXU_DTYPE),
        "bo": jnp.zeros((L, 1, D), jnp.float32),
        "ln1_g": jnp.ones((L, 1, D), jnp.float32),
        "ln1_b": jnp.zeros((L, 1, D), jnp.float32),
        "w1": nrm(ks[6], (L, D, F)).astype(MXU_DTYPE),
        "b1": jnp.zeros((L, 1, F), jnp.float32),
        "w2": nrm(ks[7], (L, F, D)).astype(MXU_DTYPE),
        "b2": jnp.zeros((L, 1, D), jnp.float32),
        "ln2_g": jnp.ones((L, 1, D), jnp.float32),
        "ln2_b": jnp.zeros((L, 1, D), jnp.float32),
    }
    return params


# ---------------------------------- main --------------------------------------

if __name__ == "__main__":
    VOCAB = 50
    SEQ_LEN = 8
    D_MODEL = 32
    NHEAD = 4
    NUM_LAYERS = 2
    DIM_FF = 64
    INTENT_CLS = 6
    ENTITY_CLS = 10
    BATCH = 2
    PAD = 0

    key = jax.random.PRNGKey(0)
    k_tok, k_param = jax.random.split(key)

    # deterministic small input: tokens in [1, VOCAB), trailing positions padded
    x = jax.random.randint(k_tok, (BATCH, SEQ_LEN), 1, VOCAB, dtype=jnp.int32)
    x = x.at[0, 6:].set(PAD)
    x = x.at[1, 7:].set(PAD)

    params = init_params(
        k_param, vocab_size=VOCAB, seq_len=SEQ_LEN, d_model=D_MODEL,
        nhead=NHEAD, num_layers=NUM_LAYERS, dim_feedforward=DIM_FF,
        intent_class_num=INTENT_CLS, entity_class_num=ENTITY_CLS)

    fwd = jax.jit(functools.partial(
        embedding_transformer_forward, nhead=NHEAD, pad_token_id=PAD))
    intent, entity = fwd(x, params)
    intent = jax.block_until_ready(intent)
    entity = jax.block_until_ready(entity)

    assert intent.shape == (BATCH, INTENT_CLS)
    assert entity.shape == (BATCH, SEQ_LEN, ENTITY_CLS)
    assert bool(jnp.all(jnp.isfinite(intent))) and bool(jnp.all(jnp.isfinite(entity)))
    print("KERNEL_OK")
</pallas_src>

<mosaic_0001>
module attributes {stable_mosaic.version = 11 : i64} {
  func.func @_fused_forward_kernel(%arg0: i32, %arg1: memref<16x32xf32, #tpu.memory_space<vmem>>, %arg2: memref<2x1x8xf32, #tpu.memory_space<vmem>>, %arg3: memref<1x32x96xbf16, #tpu.memory_space<vmem>>, %arg4: memref<1x1x96xf32, #tpu.memory_space<vmem>>, %arg5: memref<1x32x32xbf16, #tpu.memory_space<vmem>>, %arg6: memref<1x1x32xf32, #tpu.memory_space<vmem>>, %arg7: memref<1x1x32xf32, #tpu.memory_space<vmem>>, %arg8: memref<1x1x32xf32, #tpu.memory_space<vmem>>, %arg9: memref<1x32x64xbf16, #tpu.memory_space<vmem>>, %arg10: memref<1x1x64xf32, #tpu.memory_space<vmem>>, %arg11: memref<1x64x32xbf16, #tpu.memory_space<vmem>>, %arg12: memref<1x1x32xf32, #tpu.memory_space<vmem>>, %arg13: memref<1x1x32xf32, #tpu.memory_space<vmem>>, %arg14: memref<1x1x32xf32, #tpu.memory_space<vmem>>, %arg15: memref<1x32xf32, #tpu.memory_space<vmem>>, %arg16: memref<1x32xf32, #tpu.memory_space<vmem>>, %arg17: memref<32x128xbf16, #tpu.memory_space<vmem>>, %arg18: memref<1x128xf32, #tpu.memory_space<vmem>>, %arg19: memref<32x128xbf16, #tpu.memory_space<vmem>>, %arg20: memref<1x128xf32, #tpu.memory_space<vmem>>, %arg21: memref<2x128xf32, #tpu.memory_space<vmem>>, %arg22: memref<16x128xf32, #tpu.memory_space<vmem>>, %arg23: memref<16x32xf32, #tpu.memory_space<vmem>>) attributes {dimension_semantics = [#tpu.dimension_semantics<arbitrary>], iteration_bounds = array<i64: 2>, scalar_prefetch = 0 : i64, scratch_operands = 1 : i64, tpu.core_type = #tpu.core_type<tc>, window_params = [{pipeline_mode = #tpu.pipeline_mode<synchronous>, transform_indices = @transform_0, window_bounds = array<i64: 16, 32>}, {pipeline_mode = #tpu.pipeline_mode<synchronous>, transform_indices = @transform_1, window_bounds = array<i64: 2, 1, 8>}, {transform_indices = @transform_2, window_bounds = array<i64: 1, 32, 96>}, {transform_indices = @transform_3, window_bounds = array<i64: 1, 1, 96>}, {transform_indices = @transform_4, window_bounds = array<i64: 1, 32, 32>}, {transform_indices = @transform_5, window_bounds = array<i64: 1, 1, 32>}, {transform_indices = @transform_6, window_bounds = array<i64: 1, 1, 32>}, {transform_indices = @transform_7, window_bounds = array<i64: 1, 1, 32>}, {transform_indices = @transform_8, window_bounds = array<i64: 1, 32, 64>}, {transform_indices = @transform_9, window_bounds = array<i64: 1, 1, 64>}, {transform_indices = @transform_10, window_bounds = array<i64: 1, 64, 32>}, {transform_indices = @transform_11, window_bounds = array<i64: 1, 1, 32>}, {transform_indices = @transform_12, window_bounds = array<i64: 1, 1, 32>}, {transform_indices = @transform_13, window_bounds = array<i64: 1, 1, 32>}, {pipeline_mode = #tpu.pipeline_mode<synchronous>, transform_indices = @transform_14, window_bounds = array<i64: 1, 32>}, {pipeline_mode = #tpu.pipeline_mode<synchronous>, transform_indices = @transform_15, window_bounds = array<i64: 1, 32>}, {pipeline_mode = #tpu.pipeline_mode<synchronous>, transform_indices = @transform_16, window_bounds = array<i64: 32, 128>}, {pipeline_mode = #tpu.pipeline_mode<synchronous>, transform_indices = @transform_17, window_bounds = array<i64: 1, 128>}, {pipeline_mode = #tpu.pipeline_mode<synchronous>, transform_indices = @transform_18, window_bounds = array<i64: 32, 128>}, {pipeline_mode = #tpu.pipeline_mode<synchronous>, transform_indices = @transform_19, window_bounds = array<i64: 1, 128>}, {pipeline_mode = #tpu.pipeline_mode<synchronous>, transform_indices = @transform_20, window_bounds = array<i64: 2, 128>}, {pipeline_mode = #tpu.pipeline_mode<synchronous>, transform_indices = @transform_21, window_bounds = array<i64: 16, 128>}]} {
    %c0_i32 = arith.constant 0 : i32
    %0 = arith.cmpi eq, %arg0, %c0_i32 : i32
    %1 = arith.extui %0 : i1 to i32
    %c0_i32_0 = arith.constant 0 : i32
    %2 = arith.cmpi ne, %1, %c0_i32_0 : i32
    scf.if %2 {
      %c0_78 = arith.constant 0 : index
      %c0_79 = arith.constant 0 : index
      %195 = vector.load %arg1[%c0_78, %c0_79] : memref<16x32xf32, #tpu.memory_space<vmem>>, vector<16x32xf32>
      %c0_80 = arith.constant 0 : index
      %c0_81 = arith.constant 0 : index
      %196 = vector.load %arg23[%c0_80, %c0_81] : memref<16x32xf32, #tpu.memory_space<vmem>>, vector<16x32xf32>
      tpu.vector_store %arg23[%c0_80, %c0_81], %195 {strides = array<i32>} : memref<16x32xf32, #tpu.memory_space<vmem>>, vector<16x32xf32>,
    } else {
    }
    %c0 = arith.constant 0 : index
    %c0_1 = arith.constant 0 : index
    %3 = vector.load %arg23[%c0, %c0_1] : memref<16x32xf32, #tpu.memory_space<vmem>>, vector<16x32xf32>
    %4 = arith.truncf %3 : vector<16x32xf32> to vector<16x32xbf16>
    %c0_2 = arith.constant 0 : index
    %c0_3 = arith.constant 0 : index
    %c0_4 = arith.constant 0 : index
    %5 = vector.load %arg3[%c0_2, %c0_3, %c0_4] : memref<1x32x96xbf16, #tpu.memory_space<vmem>>, vector<1x32x96xbf16>
    %6 = vector.shape_cast %5 : vector<1x32x96xbf16> to vector<32x96xbf16>
    %cst = arith.constant dense<0.000000e+00> : vector<16x96xf32>
    %7 = tpu.matmul %4, %6, %cst {dimension_numbers = #tpu.dot_dimension_numbers<[1], [0], [0], [1], [0, 0, 1, 1], [], []>} : vector<16x32xbf16>, vector<32x96xbf16>, vector<16x96xf32> -> vector<16x96xf32>
    %c0_5 = arith.constant 0 : index
    %c0_6 = arith.constant 0 : index
    %c0_7 = arith.constant 0 : index
    %8 = vector.load %arg4[%c0_5, %c0_6, %c0_7] : memref<1x1x96xf32, #tpu.memory_space<vmem>>, vector<1x1x96xf32>
    %9 = vector.shape_cast %8 : vector<1x1x96xf32> to vector<1x96xf32>
    %10 = vector.broadcast %9 : vector<1x96xf32> to vector<16x96xf32>
    %11 = arith.addf %7, %10 : vector<16x96xf32>
    %12 = vector.extract_strided_slice %11 {offsets = [0, 0], sizes = [16, 32], strides = [1, 1]} : vector<16x96xf32> to vector<16x32xf32>
    %13 = vector.shape_cast %12 : vector<16x32xf32> to vector<2x8x32xf32>
    %14 = vector.extract_strided_slice %11 {offsets = [0, 32], sizes = [16, 32], strides = [1, 1]} : vector<16x96xf32> to vector<16x32xf32>
    %15 = vector.shape_cast %14 : vector<16x32xf32> to vector<2x8x32xf32>
    %16 = vector.extract_strided_slice %11 {offsets = [0, 64], sizes = [16, 32], strides = [1, 1]} : vector<16x96xf32> to vector<16x32xf32>
    %17 = vector.shape_cast %16 : vector<16x32xf32> to vector<2x8x32xf32>
    %c0_8 = arith.constant 0 : index
    %c0_9 = arith.constant 0 : index
    %c0_10 = arith.constant 0 : index
    %18 = vector.load %arg2[%c0_8, %c0_9, %c0_10] : memref<2x1x8xf32, #tpu.memory_space<vmem>>, vector<2x1x8xf32>
    %19 = vector.shape_cast %18 : vector<2x1x8xf32> to vector<2x1x8xf32>
    %20 = vector.broadcast %19 : vector<2x1x8xf32> to vector<2x8x8xf32>
    %21 = vector.extract_strided_slice %13 {offsets = [0, 0, 0], sizes = [2, 8, 8], strides = [1, 1, 1]} : vector<2x8x32xf32> to vector<2x8x8xf32>
    %22 = arith.truncf %21 : vector<2x8x8xf32> to vector<2x8x8xbf16>
    %23 = vector.extract_strided_slice %15 {offsets = [0, 0, 0], sizes = [2, 8, 8], strides = [1, 1, 1]} : vector<2x8x32xf32> to vector<2x8x8xf32>
    %24 = arith.truncf %23 : vector<2x8x8xf32> to vector<2x8x8xbf16>
    "tpu.trace_start"() <{level = 10 : i32, message = "bqc,bkc->bqk"}> : () -> ()
    %cst_11 = arith.constant dense<0.000000e+00> : vector<2x8x8xf32>
    %25 = tpu.matmul %22, %24, %cst_11 {dimension_numbers = #tpu.dot_dimension_numbers<[2], [2], [1], [1], [0, 0, 0, 1, 1, 1], [0], [0]>} : vector<2x8x8xbf16>, vector<2x8x8xbf16>, vector<2x8x8xf32> -> vector<2x8x8xf32>
    "tpu.trace_stop"() : () -> ()
    %cst_12 = arith.constant 0.353553385 : f32
    %26 = vector.broadcast %cst_12 : f32 to vector<2x8x8xf32>
    %27 = arith.mulf %25, %26 : vector<2x8x8xf32>
    %28 = arith.addf %27, %20 : vector<2x8x8xf32>
    %cst_13 = arith.constant dense<0xFF800000> : vector<2x8xf32>
    %29 = vector.multi_reduction <maximumf>, %28, %cst_13 [2] : vector<2x8x8xf32> to vector<2x8xf32>
    %30 = vector.shape_cast %29 : vector<2x8xf32> to vector<2x8x1xf32>
    %31 = vector.broadcast %30 : vector<2x8x1xf32> to vector<2x8x8xf32>
    %32 = arith.subf %28, %31 : vector<2x8x8xf32>
    %33 = math.exp %32 : vector<2x8x8xf32>
    %cst_14 = arith.constant dense<0.000000e+00> : vector<2x8xf32>
    %34 = vector.multi_reduction <add>, %33, %cst_14 [2] : vector<2x8x8xf32> to vector<2x8xf32>
    %35 = vector.shape_cast %34 : vector<2x8xf32> to vector<2x8x1xf32>
    %36 = tpu.reciprocal %35 {approx = true} : vector<2x8x1xf32> -> vector<2x8x1xf32>
    %37 = vector.broadcast %36 : vector<2x8x1xf32> to vector<2x8x8xf32>
    %38 = arith.mulf %33, %37 : vector<2x8x8xf32>
    %39 = arith.truncf %38 : vector<2x8x8xf32> to vector<2x8x8xbf16>
    %40 = vector.extract_strided_slice %17 {offsets = [0, 0, 0], sizes = [2, 8, 8], strides = [1, 1, 1]} : vector<2x8x32xf32> to vector<2x8x8xf32>
    %41 = arith.truncf %40 : vector<2x8x8xf32> to vector<2x8x8xbf16>
    "tpu.trace_start"() <{level = 10 : i32, message = "bqk,bkc->bqc"}> : () -> ()
    %cst_15 = arith.constant dense<0.000000e+00> : vector<2x8x8xf32>
    %42 = tpu.matmul %39, %41, %cst_15 {dimension_numbers = #tpu.dot_dimension_numbers<[2], [1], [1], [2], [0, 0, 0, 1, 1, 2], [0], [0]>} : vector<2x8x8xbf16>, vector<2x8x8xbf16>, vector<2x8x8xf32> -> vector<2x8x8xf32>
    "tpu.trace_stop"() : () -> ()
    %43 = vector.extract_strided_slice %13 {offsets = [0, 0, 8], sizes = [2, 8, 8], strides = [1, 1, 1]} : vector<2x8x32xf32> to vector<2x8x8xf32>
    %44 = arith.truncf %43 : vector<2x8x8xf32> to vector<2x8x8xbf16>
    %45 = vector.extract_strided_slice %15 {offsets = [0, 0, 8], sizes = [2, 8, 8], strides = [1, 1, 1]} : vector<2x8x32xf32> to vector<2x8x8xf32>
    %46 = arith.truncf %45 : vector<2x8x8xf32> to vector<2x8x8xbf16>
    "tpu.trace_start"() <{level = 10 : i32, message = "bqc,bkc->bqk"}> : () -> ()
    %cst_16 = arith.constant dense<0.000000e+00> : vector<2x8x8xf32>
    %47 = tpu.matmul %44, %46, %cst_16 {dimension_numbers = #tpu.dot_dimension_numbers<[2], [2], [1], [1], [0, 0, 0, 1, 1, 1], [0], [0]>} : vector<2x8x8xbf16>, vector<2x8x8xbf16>, vector<2x8x8xf32> -> vector<2x8x8xf32>
    "tpu.trace_stop"() : () -> ()
    %cst_17 = arith.constant 0.353553385 : f32
    %48 = vector.broadcast %cst_17 : f32 to vector<2x8x8xf32>
    %49 = arith.mulf %47, %48 : vector<2x8x8xf32>
    %50 = arith.addf %49, %20 : vector<2x8x8xf32>
    %cst_18 = arith.constant dense<0xFF800000> : vector<2x8xf32>
    %51 = vector.multi_reduction <maximumf>, %50, %cst_18 [2] : vector<2x8x8xf32> to vector<2x8xf32>
    %52 = vector.shape_cast %51 : vector<2x8xf32> to vector<2x8x1xf32>
    %53 = vector.broadcast %52 : vector<2x8x1xf32> to vector<2x8x8xf32>
    %54 = arith.subf %50, %53 : vector<2x8x8xf32>
    %55 = math.exp %54 : vector<2x8x8xf32>
    %cst_19 = arith.constant dense<0.000000e+00> : vector<2x8xf32>
    %56 = vector.multi_reduction <add>, %55, %cst_19 [2] : vector<2x8x8xf32> to vector<2x8xf32>
    %57 = vector.shape_cast %56 : vector<2x8xf32> to vector<2x8x1xf32>
    %58 = tpu.reciprocal %57 {approx = true} : vector<2x8x1xf32> -> vector<2x8x1xf32>
    %59 = vector.broadcast %58 : vector<2x8x1xf32> to vector<2x8x8xf32>
    %60 = arith.mulf %55, %59 : vector<2x8x8xf32>
    %61 = arith.truncf %60 : vector<2x8x8xf32> to vector<2x8x8xbf16>
    %62 = vector.extract_strided_slice %17 {offsets = [0, 0, 8], sizes = [2, 8, 8], strides = [1, 1, 1]} : vector<2x8x32xf32> to vector<2x8x8xf32>
    %63 = arith.truncf %62 : vector<2x8x8xf32> to vector<2x8x8xbf16>
    "tpu.trace_start"() <{level = 10 : i32, message = "bqk,bkc->bqc"}> : () -> ()
    %cst_20 = arith.constant dense<0.000000e+00> : vector<2x8x8xf32>
    %64 = tpu.matmul %61, %63, %cst_20 {dimension_numbers = #tpu.dot_dimension_numbers<[2], [1], [1], [2], [0, 0, 0, 1, 1, 2], [0], [0]>} : vector<2x8x8xbf16>, vector<2x8x8xbf16>, vector<2x8x8xf32> -> vector<2x8x8xf32>
    "tpu.trace_stop"() : () -> ()
    %65 = vector.extract_strided_slice %13 {offsets = [0, 0, 16], sizes = [2, 8, 8], strides = [1, 1, 1]} : vector<2x8x32xf32> to vector<2x8x8xf32>
    %66 = arith.truncf %65 : vector<2x8x8xf32> to vector<2x8x8xbf16>
    %67 = vector.extract_strided_slice %15 {offsets = [0, 0, 16], sizes = [2, 8, 8], strides = [1, 1, 1]} : vector<2x8x32xf32> to vector<2x8x8xf32>
    %68 = arith.truncf %67 : vector<2x8x8xf32> to vector<2x8x8xbf16>
    "tpu.trace_start"() <{level = 10 : i32, message = "bqc,bkc->bqk"}> : () -> ()
    %cst_21 = arith.constant dense<0.000000e+00> : vector<2x8x8xf32>
    %69 = tpu.matmul %66, %68, %cst_21 {dimension_numbers = #tpu.dot_dimension_numbers<[2], [2], [1], [1], [0, 0, 0, 1, 1, 1], [0], [0]>} : vector<2x8x8xbf16>, vector<2x8x8xbf16>, vector<2x8x8xf32> -> vector<2x8x8xf32>
    "tpu.trace_stop"() : () -> ()
    %cst_22 = arith.constant 0.353553385 : f32
    %70 = vector.broadcast %cst_22 : f32 to vector<2x8x8xf32>
    %71 = arith.mulf %69, %70 : vector<2x8x8xf32>
    %72 = arith.addf %71, %20 : vector<2x8x8xf32>
    %cst_23 = arith.constant dense<0xFF800000> : vector<2x8xf32>
    %73 = vector.multi_reduction <maximumf>, %72, %cst_23 [2] : vector<2x8x8xf32> to vector<2x8xf32>
    %74 = vector.shape_cast %73 : vector<2x8xf32> to vector<2x8x1xf32>
    %75 = vector.broadcast %74 : vector<2x8x1xf32> to vector<2x8x8xf32>
    %76 = arith.subf %72, %75 : vector<2x8x8xf32>
    %77 = math.exp %76 : vector<2x8x8xf32>
    %cst_24 = arith.constant dense<0.000000e+00> : vector<2x8xf32>
    %78 = vector.multi_reduction <add>, %77, %cst_24 [2] : vector<2x8x8xf32> to vector<2x8xf32>
    %79 = vector.shape_cast %78 : vector<2x8xf32> to vector<2x8x1xf32>
    %80 = tpu.reciprocal %79 {approx = true} : vector<2x8x1xf32> -> vector<2x8x1xf32>
    %81 = vector.broadcast %80 : vector<2x8x1xf32> to vector<2x8x8xf32>
    %82 = arith.mulf %77, %81 : vector<2x8x8xf32>
    %83 = arith.truncf %82 : vector<2x8x8xf32> to vector<2x8x8xbf16>
    %84 = vector.extract_strided_slice %17 {offsets = [0, 0, 16], sizes = [2, 8, 8], strides = [1, 1, 1]} : vector<2x8x32xf32> to vector<2x8x8xf32>
    %85 = arith.truncf %84 : vector<2x8x8xf32> to vector<2x8x8xbf16>
    "tpu.trace_start"() <{level = 10 : i32, message = "bqk,bkc->bqc"}> : () -> ()
    %cst_25 = arith.constant dense<0.000000e+00> : vector<2x8x8xf32>
    %86 = tpu.matmul %83, %85, %cst_25 {dimension_numbers = #tpu.dot_dimension_numbers<[2], [1], [1], [2], [0, 0, 0, 1, 1, 2], [0], [0]>} : vector<2x8x8xbf16>, vector<2x8x8xbf16>, vector<2x8x8xf32> -> vector<2x8x8xf32>
    "tpu.trace_stop"() : () -> ()
    %87 = vector.extract_strided_slice %13 {offsets = [0, 0, 24], sizes = [2, 8, 8], strides = [1, 1, 1]} : vector<2x8x32xf32> to vector<2x8x8xf32>
    %88 = arith.truncf %87 : vector<2x8x8xf32> to vector<2x8x8xbf16>
    %89 = vector.extract_strided_slice %15 {offsets = [0, 0, 24], sizes = [2, 8, 8], strides = [1, 1, 1]} : vector<2x8x32xf32> to vector<2x8x8xf32>
    %90 = arith.truncf %89 : vector<2x8x8xf32> to vector<2x8x8xbf16>
    "tpu.trace_start"() <{level = 10 : i32, message = "bqc,bkc->bqk"}> : () -> ()
    %cst_26 = arith.constant dense<0.000000e+00> : vector<2x8x8xf32>
    %91 = tpu.matmul %88, %90, %cst_26 {dimension_numbers = #tpu.dot_dimension_numbers<[2], [2], [1], [1], [0, 0, 0, 1, 1, 1], [0], [0]>} : vector<2x8x8xbf16>, vector<2x8x8xbf16>, vector<2x8x8xf32> -> vector<2x8x8xf32>
    "tpu.trace_stop"() : () -> ()
    %cst_27 = arith.constant 0.353553385 : f32
    %92 = vector.broadcast %cst_27 : f32 to vector<2x8x8xf32>
    %93 = arith.mulf %91, %92 : vector<2x8x8xf32>
    %94 = arith.addf %93, %20 : vector<2x8x8xf32>
    %cst_28 = arith.constant dense<0xFF800000> : vector<2x8xf32>
    %95 = vector.multi_reduction <maximumf>, %94, %cst_28 [2] : vector<2x8x8xf32> to vector<2x8xf32>
    %96 = vector.shape_cast %95 : vector<2x8xf32> to vector<2x8x1xf32>
    %97 = vector.broadcast %96 : vector<2x8x1xf32> to vector<2x8x8xf32>
    %98 = arith.subf %94, %97 : vector<2x8x8xf32>
    %99 = math.exp %98 : vector<2x8x8xf32>
    %cst_29 = arith.constant dense<0.000000e+00> : vector<2x8xf32>
    %100 = vector.multi_reduction <add>, %99, %cst_29 [2] : vector<2x8x8xf32> to vector<2x8xf32>
    %101 = vector.shape_cast %100 : vector<2x8xf32> to vector<2x8x1xf32>
    %102 = tpu.reciprocal %101 {approx = true} : vector<2x8x1xf32> -> vector<2x8x1xf32>
    %103 = vector.broadcast %102 : vector<2x8x1xf32> to vector<2x8x8xf32>
    %104 = arith.mulf %99, %103 : vector<2x8x8xf32>
    %105 = arith.truncf %104 : vector<2x8x8xf32> to vector<2x8x8xbf16>
    %106 = vector.extract_strided_slice %17 {offsets = [0, 0, 24], sizes = [2, 8, 8], strides = [1, 1, 1]} : vector<2x8x32xf32> to vector<2x8x8xf32>
    %107 = arith.truncf %106 : vector<2x8x8xf32> to vector<2x8x8xbf16>
    "tpu.trace_start"() <{level = 10 : i32, message = "bqk,bkc->bqc"}> : () -> ()
    %cst_30 = arith.constant dense<0.000000e+00> : vector<2x8x8xf32>
    %108 = tpu.matmul %105, %107, %cst_30 {dimension_numbers = #tpu.dot_dimension_numbers<[2], [1], [1], [2], [0, 0, 0, 1, 1, 2], [0], [0]>} : vector<2x8x8xbf16>, vector<2x8x8xbf16>, vector<2x8x8xf32> -> vector<2x8x8xf32>
    "tpu.trace_stop"() : () -> ()
    %109 = tpu.concatenate %42, %64, %86, %108 in 2 : vector<2x8x8xf32>, vector<2x8x8xf32>, vector<2x8x8xf32>, vector<2x8x8xf32> -> vector<2x8x32xf32>
    %110 = vector.shape_cast %109 : vector<2x8x32xf32> to vector<16x32xf32>
    %111 = arith.truncf %110 : vector<16x32xf32> to vector<16x32xbf16>
    %c0_31 = arith.constant 0 : index
    %c0_32 = arith.constant 0 : index
    %c0_33 = arith.constant 0 : index
    %112 = vector.load %arg5[%c0_31, %c0_32, %c0_33] : memref<1x32x32xbf16, #tpu.memory_space<vmem>>, vector<1x32x32xbf16>
    %113 = vector.shape_cast %112 : vector<1x32x32xbf16> to vector<32x32xbf16>
    %cst_34 = arith.constant dense<0.000000e+00> : vector<16x32xf32>
    %114 = tpu.matmul %111, %113, %cst_34 {dimension_numbers = #tpu.dot_dimension_numbers<[1], [0], [0], [1], [0, 0, 1, 1], [], []>} : vector<16x32xbf16>, vector<32x32xbf16>, vector<16x32xf32> -> vector<16x32xf32>
    %c0_35 = arith.constant 0 : index
    %c0_36 = arith.constant 0 : index
    %c0_37 = arith.constant 0 : index
    %115 = vector.load %arg6[%c0_35, %c0_36, %c0_37] : memref<1x1x32xf32, #tpu.memory_space<vmem>>, vector<1x1x32xf32>
    %116 = vector.shape_cast %115 : vector<1x1x32xf32> to vector<1x32xf32>
    %117 = vector.broadcast %116 : vector<1x32xf32> to vector<16x32xf32>
    %118 = arith.addf %114, %117 : vector<16x32xf32>
    %119 = arith.addf %3, %118 : vector<16x32xf32>
    %c0_38 = arith.constant 0 : index
    %c0_39 = arith.constant 0 : index
    %c0_40 = arith.constant 0 : index
    %120 = vector.load %arg7[%c0_38, %c0_39, %c0_40] : memref<1x1x32xf32, #tpu.memory_space<vmem>>, vector<1x1x32xf32>
    %121 = vector.shape_cast %120 : vector<1x1x32xf32> to vector<1x32xf32>
    %c0_41 = arith.constant 0 : index
    %c0_42 = arith.constant 0 : index
    %c0_43 = arith.constant 0 : index
    %122 = vector.load %arg8[%c0_41, %c0_42, %c0_43] : memref<1x1x32xf32, #tpu.memory_space<vmem>>, vector<1x1x32xf32>
    %123 = vector.shape_cast %122 : vector<1x1x32xf32> to vector<1x32xf32>
    %cst_44 = arith.constant dense<0.000000e+00> : vector<16xf32>
    %124 = vector.multi_reduction <add>, %119, %cst_44 [1] : vector<16x32xf32> to vector<16xf32>
    %125 = vector.shape_cast %124 : vector<16xf32> to vector<16x1xf32>
    %cst_45 = arith.constant 3.200000e+01 : f32
    %126 = vector.broadcast %cst_45 : f32 to vector<16x1xf32>
    %127 = arith.divf %125, %126 : vector<16x1xf32>
    %128 = vector.broadcast %127 : vector<16x1xf32> to vector<16x32xf32>
    %129 = arith.subf %119, %128 : vector<16x32xf32>
    %130 = arith.mulf %129, %129 : vector<16x32xf32>
    %cst_46 = arith.constant dense<0.000000e+00> : vector<16xf32>
    %131 = vector.multi_reduction <add>, %130, %cst_46 [1] : vector<16x32xf32> to vector<16xf32>
    %132 = vector.shape_cast %131 : vector<16xf32> to vector<16x1xf32>
    %cst_47 = arith.constant 3.200000e+01 : f32
    %133 = vector.broadcast %cst_47 : f32 to vector<16x1xf32>
    %134 = arith.divf %132, %133 : vector<16x1xf32>
    %135 = vector.broadcast %127 : vector<16x1xf32> to vector<16x32xf32>
    %136 = arith.subf %119, %135 : vector<16x32xf32>
    %cst_48 = arith.constant 9.99999974E-6 : f32
    %137 = vector.broadcast %cst_48 : f32 to vector<16x1xf32>
    %138 = arith.addf %134, %137 : vector<16x1xf32>
    %139 = math.rsqrt %138 : vector<16x1xf32>
    %140 = vector.broadcast %139 : vector<16x1xf32> to vector<16x32xf32>
    %141 = arith.mulf %136, %140 : vector<16x32xf32>
    %142 = vector.broadcast %121 : vector<1x32xf32> to vector<16x32xf32>
    %143 = arith.mulf %141, %142 : vector<16x32xf32>
    %144 = vector.broadcast %123 : vector<1x32xf32> to vector<16x32xf32>
    %145 = arith.addf %143, %144 : vector<16x32xf32>
    %146 = arith.truncf %145 : vector<16x32xf32> to vector<16x32xbf16>
    %c0_49 = arith.constant 0 : index
    %c0_50 = arith.constant 0 : index
    %c0_51 = arith.constant 0 : index
    %147 = vector.load %arg9[%c0_49, %c0_50, %c0_51] : memref<1x32x64xbf16, #tpu.memory_space<vmem>>, vector<1x32x64xbf16>
    %148 = vector.shape_cast %147 : vector<1x32x64xbf16> to vector<32x64xbf16>
    %cst_52 = arith.constant dense<0.000000e+00> : vector<16x64xf32>
    %149 = tpu.matmul %146, %148, %cst_52 {dimension_numbers = #tpu.dot_dimension_numbers<[1], [0], [0], [1], [0, 0, 1, 1], [], []>} : vector<16x32xbf16>, vector<32x64xbf16>, vector<16x64xf32> -> vector<16x64xf32>
    %c0_53 = arith.constant 0 : index
    %c0_54 = arith.constant 0 : index
    %c0_55 = arith.constant 0 : index
    %150 = vector.load %arg10[%c0_53, %c0_54, %c0_55] : memref<1x1x64xf32, #tpu.memory_space<vmem>>, vector<1x1x64xf32>
    %151 = vector.shape_cast %150 : vector<1x1x64xf32> to vector<1x64xf32>
    %152 = vector.broadcast %151 : vector<1x64xf32> to vector<16x64xf32>
    %153 = arith.addf %149, %152 : vector<16x64xf32>
    %cst_56 = arith.constant 0.000000e+00 : f32
    %154 = vector.broadcast %cst_56 : f32 to vector<16x64xf32>
    %155 = arith.maximumf %153, %154 : vector<16x64xf32>
    %156 = arith.truncf %155 : vector<16x64xf32> to vector<16x64xbf16>
    %c0_57 = arith.constant 0 : index
    %c0_58 = arith.constant 0 : index
    %c0_59 = arith.constant 0 : index
    %157 = vector.load %arg11[%c0_57, %c0_58, %c0_59] : memref<1x64x32xbf16, #tpu.memory_space<vmem>>, vector<1x64x32xbf16>
    %158 = vector.shape_cast %157 : vector<1x64x32xbf16> to vector<64x32xbf16>
    %cst_60 = arith.constant dense<0.000000e+00> : vector<16x32xf32>
    %159 = tpu.matmul %156, %158, %cst_60 {dimension_numbers = #tpu.dot_dimension_numbers<[1], [0], [0], [1], [0, 0, 1, 1], [], []>} : vector<16x64xbf16>, vector<64x32xbf16>, vector<16x32xf32> -> vector<16x32xf32>
    %c0_61 = arith.constant 0 : index
    %c0_62 = arith.constant 0 : index
    %c0_63 = arith.constant 0 : index
    %160 = vector.load %arg12[%c0_61, %c0_62, %c0_63] : memref<1x1x32xf32, #tpu.memory_space<vmem>>, vector<1x1x32xf32>
    %161 = vector.shape_cast %160 : vector<1x1x32xf32> to vector<1x32xf32>
    %162 = vector.broadcast %161 : vector<1x32xf32> to vector<16x32xf32>
    %163 = arith.addf %159, %162 : vector<16x32xf32>
    %164 = arith.addf %145, %163 : vector<16x32xf32>
    %c0_64 = arith.constant 0 : index
    %c0_65 = arith.constant 0 : index
    %c0_66 = arith.constant 0 : index
    %165 = vector.load %arg13[%c0_64, %c0_65, %c0_66] : memref<1x1x32xf32, #tpu.memory_space<vmem>>, vector<1x1x32xf32>
    %166 = vector.shape_cast %165 : vector<1x1x32xf32> to vector<1x32xf32>
    %c0_67 = arith.constant 0 : index
    %c0_68 = arith.constant 0 : index
    %c0_69 = arith.constant 0 : index
    %167 = vector.load %arg14[%c0_67, %c0_68, %c0_69] : memref<1x1x32xf32, #tpu.memory_space<vmem>>, vector<1x1x32xf32>
    %168 = vector.shape_cast %167 : vector<1x1x32xf32> to vector<1x32xf32>
    %cst_70 = arith.constant dense<0.000000e+00> : vector<16xf32>
    %169 = vector.multi_reduction <add>, %164, %cst_70 [1] : vector<16x32xf32> to vector<16xf32>
    %170 = vector.shape_cast %169 : vector<16xf32> to vector<16x1xf32>
    %cst_71 = arith.constant 3.200000e+01 : f32
    %171 = vector.broadcast %cst_71 : f32 to vector<16x1xf32>
    %172 = arith.divf %170, %171 : vector<16x1xf32>
    %173 = vector.broadcast %172 : vector<16x1xf32> to vector<16x32xf32>
    %174 = arith.subf %164, %173 : vector<16x32xf32>
    %175 = arith.mulf %174, %174 : vector<16x32xf32>
    %cst_72 = arith.constant dense<0.000000e+00> : vector<16xf32>
    %176 = vector.multi_reduction <add>, %175, %cst_72 [1] : vector<16x32xf32> to vector<16xf32>
    %177 = vector.shape_cast %176 : vector<16xf32> to vector<16x1xf32>
    %cst_73 = arith.constant 3.200000e+01 : f32
    %178 = vector.broadcast %cst_73 : f32 to vector<16x1xf32>
    %179 = arith.divf %177, %178 : vector<16x1xf32>
    %180 = vector.broadcast %172 : vector<16x1xf32> to vector<16x32xf32>
    %181 = arith.subf %164, %180 : vector<16x32xf32>
    %cst_74 = arith.constant 9.99999974E-6 : f32
    %182 = vector.broadcast %cst_74 : f32 to vector<16x1xf32>
    %183 = arith.addf %179, %182 : vector<16x1xf32>
    %184 = math.rsqrt %183 : vector<16x1xf32>
    %185 = vector.broadcast %184 : vector<16x1xf32> to vector<16x32xf32>
    %186 = arith.mulf %181, %185 : vector<16x32xf32>
    %187 = vector.broadcast %166 : vector<1x32xf32> to vector<16x32xf32>
    %188 = arith.mulf %186, %187 : vector<16x32xf32>
    %189 = vector.broadcast %168 : vector<1x32xf32> to vector<16x32xf32>
    %190 = arith.addf %188, %189 : vector<16x32xf32>
    %c0_75 = arith.constant 0 : index
    %c0_76 = arith.constant 0 : index
    %191 = vector.load %arg23[%c0_75, %c0_76] : memref<16x32xf32, #tpu.memory_space<vmem>>, vector<16x32xf32>
    tpu.vector_store %arg23[%c0_75, %c0_76], %190 {strides = array<i32>} : memref<16x32xf32, #tpu.memory_space<vmem>>, vector<16x32xf32>,
    %c1_i32 = arith.constant 1 : i32
    %192 = arith.cmpi eq, %arg0, %c1_i32 : i32
    %193 = arith.extui %192 : i1 to i32
    %c0_i32_77 = arith.constant 0 : i32
    %194 = arith.cmpi ne, %193, %c0_i32_77 : i32
    scf.if %194 {
      %c0_78 = arith.constant 0 : index
      %c0_79 = arith.constant 0 : index
      %195 = vector.load %arg15[%c0_78, %c0_79] : memref<1x32xf32, #tpu.memory_space<vmem>>, vector<1x32xf32>
      %c0_80 = arith.constant 0 : index
      %c0_81 = arith.constant 0 : index
      %196 = vector.load %arg16[%c0_80, %c0_81] : memref<1x32xf32, #tpu.memory_space<vmem>>, vector<1x32xf32>
      %cst_82 = arith.constant dense<0.000000e+00> : vector<16xf32>
      %197 = vector.multi_reduction <add>, %190, %cst_82 [1] : vector<16x32xf32> to vector<16xf32>
      %198 = vector.shape_cast %197 : vector<16xf32> to vector<16x1xf32>
      %cst_83 = arith.constant 3.200000e+01 : f32
      %199 = vector.broadcast %cst_83 : f32 to vector<16x1xf32>
      %200 = arith.divf %198, %199 : vector<16x1xf32>
      %201 = vector.broadcast %200 : vector<16x1xf32> to vector<16x32xf32>
      %202 = arith.subf %190, %201 : vector<16x32xf32>
      %203 = arith.mulf %202, %202 : vector<16x32xf32>
      %cst_84 = arith.constant dense<0.000000e+00> : vector<16xf32>
      %204 = vector.multi_reduction <add>, %203, %cst_84 [1] : vector<16x32xf32> to vector<16xf32>
      %205 = vector.shape_cast %204 : vector<16xf32> to vector<16x1xf32>
      %cst_85 = arith.constant 3.200000e+01 : f32
      %206 = vector.broadcast %cst_85 : f32 to vector<16x1xf32>
      %207 = arith.divf %205, %206 : vector<16x1xf32>
      %208 = vector.broadcast %200 : vector<16x1xf32> to vector<16x32xf32>
      %209 = arith.subf %190, %208 : vector<16x32xf32>
      %cst_86 = arith.constant 9.99999974E-6 : f32
      %210 = vector.broadcast %cst_86 : f32 to vector<16x1xf32>
      %211 = arith.addf %207, %210 : vector<16x1xf32>
      %212 = math.rsqrt %211 : vector<16x1xf32>
      %213 = vector.broadcast %212 : vector<16x1xf32> to vector<16x32xf32>
      %214 = arith.mulf %209, %213 : vector<16x32xf32>
      %215 = vector.broadcast %195 : vector<1x32xf32> to vector<16x32xf32>
      %216 = arith.mulf %214, %215 : vector<16x32xf32>
      %217 = vector.broadcast %196 : vector<1x32xf32> to vector<16x32xf32>
      %218 = arith.addf %216, %217 : vector<16x32xf32>
      %219 = arith.truncf %218 : vector<16x32xf32> to vector<16x32xbf16>
      %c0_87 = arith.constant 0 : index
      %c0_88 = arith.constant 0 : index
      %220 = vector.load %arg19[%c0_87, %c0_88] : memref<32x128xbf16, #tpu.memory_space<vmem>>, vector<32x128xbf16>
      %cst_89 = arith.constant dense<0.000000e+00> : vector<16x128xf32>
      %221 = tpu.matmul %219, %220, %cst_89 {dimension_numbers = #tpu.dot_dimension_numbers<[1], [0], [0], [1], [0, 0, 1, 1], [], []>} : vector<16x32xbf16>, vector<32x128xbf16>, vector<16x128xf32> -> vector<16x128xf32>
      %c0_90 = arith.constant 0 : index
      %c0_91 = arith.constant 0 : index
      %222 = vector.load %arg20[%c0_90, %c0_91] : memref<1x128xf32, #tpu.memory_space<vmem>>, vector<1x128xf32>
      %223 = vector.broadcast %222 : vector<1x128xf32> to vector<16x128xf32>
      %224 = arith.addf %221, %223 : vector<16x128xf32>
      %c0_92 = arith.constant 0 : index
      %c0_93 = arith.constant 0 : index
      %225 = vector.load %arg22[%c0_92, %c0_93] : memref<16x128xf32, #tpu.memory_space<vmem>>, vector<16x128xf32>
      tpu.vector_store %arg22[%c0_92, %c0_93], %224 {strides = array<i32>} : memref<16x128xf32, #tpu.memory_space<vmem>>, vector<16x128xf32>,
      %226 = vector.extract_strided_slice %218 {offsets = [0, 0], sizes = [1, 32], strides = [1, 1]} : vector<16x32xf32> to vector<1x32xf32>
      %227 = vector.extract_strided_slice %218 {offsets = [8, 0], sizes = [1, 32], strides = [1, 1]} : vector<16x32xf32> to vector<1x32xf32>
      %228 = tpu.concatenate %226, %227 in 0 : vector<1x32xf32>, vector<1x32xf32> -> vector<2x32xf32>
      %229 = arith.truncf %228 : vector<2x32xf32> to vector<2x32xbf16>
      %c0_94 = arith.constant 0 : index
      %c0_95 = arith.constant 0 : index
      %230 = vector.load %arg17[%c0_94, %c0_95] : memref<32x128xbf16, #tpu.memory_space<vmem>>, vector<32x128xbf16>
      %cst_96 = arith.constant dense<0.000000e+00> : vector<2x128xf32>
      %231 = tpu.matmul %229, %230, %cst_96 {dimension_numbers = #tpu.dot_dimension_numbers<[1], [0], [0], [1], [0, 0, 1, 1], [], []>} : vector<2x32xbf16>, vector<32x128xbf16>, vector<2x128xf32> -> vector<2x128xf32>
      %c0_97 = arith.constant 0 : index
      %c0_98 = arith.constant 0 : index
      %232 = vector.load %arg18[%c0_97, %c0_98] : memref<1x128xf32, #tpu.memory_space<vmem>>, vector<1x128xf32>
      %233 = vector.broadcast %232 : vector<1x128xf32> to vector<2x128xf32>
      %234 = arith.addf %231, %233 : vector<2x128xf32>
      %c0_99 = arith.constant 0 : index
      %c0_100 = arith.constant 0 : index
      %235 = vector.load %arg21[%c0_99, %c0_100] : memref<2x128xf32, #tpu.memory_space<vmem>>, vector<2x128xf32>
      tpu.vector_store %arg21[%c0_99, %c0_100], %234 {strides = array<i32>} : memref<2x128xf32, #tpu.memory_space<vmem>>, vector<2x128xf32>,
    } else {
    }
    return
  }
  func.func @transform_0(%arg0: i32) -> (i32, i32) {
    %c0_i32 = arith.constant 0 : i32
    %c0_i32_0 = arith.constant 0 : i32
    %c0_i32_1 = arith.constant 0 : i32
    return %c0_i32, %c0_i32_0 : i32, i32
  }
  func.func @transform_1(%arg0: i32) -> (i32, i32, i32) {
    %c0_i32 = arith.constant 0 : i32
    %c0_i32_0 = arith.constant 0 : i32
    %c0_i32_1 = arith.constant 0 : i32
    %c0_i32_2 = arith.constant 0 : i32
    return %c0_i32, %c0_i32_0, %c0_i32_1 : i32, i32, i32
  }
  func.func @transform_2(%arg0: i32) -> (i32, i32, i32) {
    %c0_i32 = arith.constant 0 : i32
    %c0_i32_0 = arith.constant 0 : i32
    %c0_i32_1 = arith.constant 0 : i32
    return %arg0, %c0_i32, %c0_i32_0 : i32, i32, i32
  }
  func.func @transform_3(%arg0: i32) -> (i32, i32, i32) {
    %c0_i32 = arith.constant 0 : i32
    %c0_i32_0 = arith.constant 0 : i32
    %c0_i32_1 = arith.constant 0 : i32
    return %arg0, %c0_i32, %c0_i32_0 : i32, i32, i32
  }
  func.func @transform_4(%arg0: i32) -> (i32, i32, i32) {
    %c0_i32 = arith.constant 0 : i32
    %c0_i32_0 = arith.constant 0 : i32
    %c0_i32_1 = arith.constant 0 : i32
    return %arg0, %c0_i32, %c0_i32_0 : i32, i32, i32
  }
  func.func @transform_5(%arg0: i32) -> (i32, i32, i32) {
    %c0_i32 = arith.constant 0 : i32
    %c0_i32_0 = arith.constant 0 : i32
    %c0_i32_1 = arith.constant 0 : i32
    return %arg0, %c0_i32, %c0_i32_0 : i32, i32, i32
  }
  func.func @transform_6(%arg0: i32) -> (i32, i32, i32) {
    %c0_i32 = arith.constant 0 : i32
    %c0_i32_0 = arith.constant 0 : i32
    %c0_i32_1 = arith.constant 0 : i32
    return %arg0, %c0_i32, %c0_i32_0 : i32, i32, i32
  }
  func.func @transform_7(%arg0: i32) -> (i32, i32, i32) {
    %c0_i32 = arith.constant 0 : i32
    %c0_i32_0 = arith.constant 0 : i32
    %c0_i32_1 = arith.constant 0 : i32
    return %arg0, %c0_i32, %c0_i32_0 : i32, i32, i32
  }
  func.func @transform_8(%arg0: i32) -> (i32, i32, i32) {
    %c0_i32 = arith.constant 0 : i32
    %c0_i32_0 = arith.constant 0 : i32
    %c0_i32_1 = arith.constant 0 : i32
    return %arg0, %c0_i32, %c0_i32_0 : i32, i32, i32
  }
  func.func @transform_9(%arg0: i32) -> (i32, i32, i32) {
    %c0_i32 = arith.constant 0 : i32
    %c0_i32_0 = arith.constant 0 : i32
    %c0_i32_1 = arith.constant 0 : i32
    return %arg0, %c0_i32, %c0_i32_0 : i32, i32, i32
  }
  func.func @transform_10(%arg0: i32) -> (i32, i32, i32) {
    %c0_i32 = arith.constant 0 : i32
    %c0_i32_0 = arith.constant 0 : i32
    %c0_i32_1 = arith.constant 0 : i32
    return %arg0, %c0_i32, %c0_i32_0 : i32, i32, i32
  }
  func.func @transform_11(%arg0: i32) -> (i32, i32, i32) {
    %c0_i32 = arith.constant 0 : i32
    %c0_i32_0 = arith.constant 0 : i32
    %c0_i32_1 = arith.constant 0 : i32
    return %arg0, %c0_i32, %c0_i32_0 : i32, i32, i32
  }
  func.func @transform_12(%arg0: i32) -> (i32, i32, i32) {
    %c0_i32 = arith.constant 0 : i32
    %c0_i32_0 = arith.constant 0 : i32
    %c0_i32_1 = arith.constant 0 : i32
    return %arg0, %c0_i32, %c0_i32_0 : i32, i32, i32
  }
  func.func @transform_13(%arg0: i32) -> (i32, i32, i32) {
    %c0_i32 = arith.constant 0 : i32
    %c0_i32_0 = arith.constant 0 : i32
    %c0_i32_1 = arith.constant 0 : i32
    return %arg0, %c0_i32, %c0_i32_0 : i32, i32, i32
  }
  func.func @transform_14(%arg0: i32) -> (i32, i32) {
    %c0_i32 = arith.constant 0 : i32
    %c0_i32_0 = arith.constant 0 : i32
    %c0_i32_1 = arith.constant 0 : i32
    return %c0_i32, %c0_i32_0 : i32, i32
  }
  func.func @transform_15(%arg0: i32) -> (i32, i32) {
    %c0_i32 = arith.constant 0 : i32
    %c0_i32_0 = arith.constant 0 : i32
    %c0_i32_1 = arith.constant 0 : i32
    return %c0_i32, %c0_i32_0 : i32, i32
  }
  func.func @transform_16(%arg0: i32) -> (i32, i32) {
    %c0_i32 = arith.constant 0 : i32
    %c0_i32_0 = arith.constant 0 : i32
    %c0_i32_1 = arith.constant 0 : i32
    return %c0_i32, %c0_i32_0 : i32, i32
  }
  func.func @transform_17(%arg0: i32) -> (i32, i32) {
    %c0_i32 = arith.constant 0 : i32
    %c0_i32_0 = arith.constant 0 : i32
    %c0_i32_1 = arith.constant 0 : i32
    return %c0_i32, %c0_i32_0 : i32, i32
  }
  func.func @transform_18(%arg0: i32) -> (i32, i32) {
    %c0_i32 = arith.constant 0 : i32
    %c0_i32_0 = arith.constant 0 : i32
    %c0_i32_1 = arith.constant 0 : i32
    return %c0_i32, %c0_i32_0 : i32, i32
  }
  func.func @transform_19(%arg0: i32) -> (i32, i32) {
    %c0_i32 = arith.constant 0 : i32
    %c0_i32_0 = arith.constant 0 : i32
    %c0_i32_1 = arith.constant 0 : i32
    return %c0_i32, %c0_i32_0 : i32, i32
  }
  func.func @transform_20(%arg0: i32) -> (i32, i32) {
    %c0_i32 = arith.constant 0 : i32
    %c0_i32_0 = arith.constant 0 : i32
    %c0_i32_1 = arith.constant 0 : i32
    return %c0_i32, %c0_i32_0 : i32, i32
  }
  func.func @transform_21(%arg0: i32) -> (i32, i32) {
    %c0_i32 = arith.constant 0 : i32
    %c0_i32_0 = arith.constant 0 : i32
    %c0_i32_1 = arith.constant 0 : i32
    return %c0_i32, %c0_i32_0 : i32, i32
  }
}

</mosaic_0001>

<llo_original>
// kernel: embedding_transformer_forward.1
$region0: #{embedding_transformer_forward.1}
  #allocation0 [shape = 'u32[]', space=smem, size = 0x4, offset = 0x4, fixed_abs, tag = 'smem constant byte address 0x4 - core index']
  #allocation1 [shape = 'u32[144,128]{1,0:T(1,128)}', space=vmem, size = 0x12000, scoped, tag = 'internal scratch']
  #allocation2 [shape = 'f32[16,32]{1,0:T(8,128)}', space=vmem, size = 0x2000, scoped, tag = 'scratch operand']
  %s0 = inlined_call_operand.vmem [shape: f32[16,32], index: 0, kind: input, shape index: {}]
  %s1 = inlined_call_operand.vmem [shape: f32[2,1,8], index: 1, kind: input, shape index: {}]
  %s2 = inlined_call_operand.vmem [shape: bf16[2,32,96], index: 2, kind: input, shape index: {}]
  %s3 = inlined_call_operand.vmem [shape: f32[2,1,96], index: 3, kind: input, shape index: {}]
  %s4 = inlined_call_operand.vmem [shape: bf16[2,32,32], index: 4, kind: input, shape index: {}]
  %s5 = inlined_call_operand.vmem [shape: f32[2,1,32], index: 5, kind: input, shape index: {}]
  %s6 = inlined_call_operand.vmem [shape: f32[2,1,32], index: 6, kind: input, shape index: {}]
  %s7 = inlined_call_operand.vmem [shape: f32[2,1,32], index: 7, kind: input, shape index: {}]
  %s8 = inlined_call_operand.vmem [shape: bf16[2,32,64], index: 8, kind: input, shape index: {}]
  %s9 = inlined_call_operand.vmem [shape: f32[2,1,64], index: 9, kind: input, shape index: {}]
  %s10 = inlined_call_operand.vmem [shape: bf16[2,64,32], index: 10, kind: input, shape index: {}]
  %s11 = inlined_call_operand.vmem [shape: f32[2,1,32], index: 11, kind: input, shape index: {}]
  %s12 = inlined_call_operand.vmem [shape: f32[2,1,32], index: 12, kind: input, shape index: {}]
  %s13 = inlined_call_operand.vmem [shape: f32[2,1,32], index: 13, kind: input, shape index: {}]
  %s14 = inlined_call_operand.vmem [shape: f32[1,32], index: 14, kind: input, shape index: {}]
  %s15 = inlined_call_operand.vmem [shape: f32[1,32], index: 15, kind: input, shape index: {}]
  %s16 = inlined_call_operand.vmem [shape: bf16[32,128], index: 16, kind: input, shape index: {}]
  %s17 = inlined_call_operand.vmem [shape: f32[1,128], index: 17, kind: input, shape index: {}]
  %s18 = inlined_call_operand.vmem [shape: bf16[32,128], index: 18, kind: input, shape index: {}]
  %s19 = inlined_call_operand.vmem [shape: f32[1,128], index: 19, kind: input, shape index: {}]
  %s20 = inlined_call_operand.hbm [shape: f32[2,128], index: 20, kind: output, shape index: {0}]
  %s21 = inlined_call_operand.hbm [shape: f32[16,128], index: 21, kind: output, shape index: {1}]
  %22 = xla_tuple %s20, %s21
  %s23 = sld [smem:[#allocation0]]
  $region129: #{embedding_transformer_forward.1} parent=0
    _
  %s25 = ssub.s32 1, %s23
  %s26 = scalar_select 0, %s25, %s23
  $region1: #{embedding_transformer_forward.1} parent=0
    #allocation3 [shape = 'u8[1024]{0}', space=vmem, size = 0x400, scoped, tag = 'output window, operand 0, single buffered']
    #allocation4 [shape = 's32[2]{0}', space=sflag, size = 0x8, scoped, tag = 'scoped memory for embedding_transformer_forward.1']
    #allocation5 [shape = 'u8[8192]{0}', space=vmem, size = 0x2000, scoped, tag = 'output window, operand 1, single buffered']
    #allocation6 [shape = 's32[1]{0}', space=sflag, size = 0x4, scoped, tag = 'scoped memory for embedding_transformer_forward.1']
    %27 = vsyncpa [#allocation4], 0
    %28 = vsyncpa [#allocation6], 0
    loop: start=0, step=1, limit=4
    $region2: #{embedding_transformer_forward.1} parent=1 // loop_pre_header
      _
    $region3: #{embedding_transformer_forward.1} parent=1 // loop_header
      %s30 = sphi 0, %s34
      %p31 = scmp.ge.s32.totalorder %s30, 4
      %s38 = sphi 0, %s38
      %s40 = sphi 0, %s38
      %s41 = sphi 0, %s40
      %s55 = sphi 0, %s41
      %s59 = sphi 0, %s59
      %s61 = sphi 0, %s59
      %s62 = sphi 0, %s61
      %s76 = sphi 0, %s62
      %s82 = sphi 0, %s84
      %s85 = sphi 0, %s82
      %s86 = sphi 0, %s85
      %s102 = sphi 0, %s86
      %s108 = sphi 0, %s110
      %s111 = sphi 0, %s108
      %s112 = sphi 0, %s111
      %s128 = sphi 0, %s112
      %s134 = sphi 0, %s136
      %s137 = sphi 0, %s134
      %s138 = sphi 0, %s137
      %s154 = sphi 0, %s138
      %s160 = sphi 0, %s162
      %s163 = sphi 0, %s160
      %s164 = sphi 0, %s163
      %s180 = sphi 0, %s164
      %s186 = sphi 0, %s188
      %s189 = sphi 0, %s186
      %s190 = sphi 0, %s189
      %s206 = sphi 0, %s190
      %s212 = sphi 0, %s214
      %s215 = sphi 0, %s212
      %s216 = sphi 0, %s215
      %s232 = sphi 0, %s216
      %s238 = sphi 0, %s240
      %s241 = sphi 0, %s238
      %s242 = sphi 0, %s241
      %s258 = sphi 0, %s242
      %s264 = sphi 0, %s266
      %s267 = sphi 0, %s264
      %s268 = sphi 0, %s267
      %s284 = sphi 0, %s268
      %s290 = sphi 0, %s292
      %s293 = sphi 0, %s290
      %s294 = sphi 0, %s293
      %s310 = sphi 0, %s294
      %s316 = sphi 0, %s318
      %s319 = sphi 0, %s316
      %s320 = sphi 0, %s319
      %s336 = sphi 0, %s320
      %s342 = sphi 0, %s344
      %s345 = sphi 0, %s342
      %s346 = sphi 0, %s345
      %s362 = sphi 0, %s346
      %s368 = sphi 0, %s370
      %s371 = sphi 0, %s368
      %s372 = sphi 0, %s371
      %s388 = sphi 0, %s372
      %s392 = sphi 0, %s392
      %s394 = sphi 0, %s392
      %s395 = sphi 0, %s394
      %s409 = sphi 0, %s395
      %s413 = sphi 0, %s413
      %s415 = sphi 0, %s413
      %s416 = sphi 0, %s415
      %s430 = sphi 0, %s416
      %s434 = sphi 0, %s434
      %s436 = sphi 0, %s434
      %s437 = sphi 0, %s436
      %s451 = sphi 0, %s437
      %s455 = sphi 0, %s455
      %s457 = sphi 0, %s455
      %s458 = sphi 0, %s457
      %s472 = sphi 0, %s458
      %s476 = sphi 0, %s476
      %s478 = sphi 0, %s476
      %s479 = sphi 0, %s478
      %s493 = sphi 0, %s479
      %s497 = sphi 0, %s497
      %s499 = sphi 0, %s497
      %s500 = sphi 0, %s499
      %s514 = sphi 0, %s500
      %s518 = sphi 0, %s518
      %s520 = sphi 0, %s518
      %s521 = sphi 0, %s520
      %s535 = sphi 0, %s521
      %s539 = sphi 0, %s539
      %s541 = sphi 0, %s539
      %s542 = sphi 0, %s541
      %s556 = sphi 0, %s542
    $region4: #{embedding_transformer_forward.1} parent=1 // loop_header_branch
      %33 = sbr.rel (%p31) target = $region8
    $region5: #{embedding_transformer_forward.1} parent=1 // loop_body
      %s35 = ssub.s32 %s30, 1
      %s36 = ssub.s32 %s30, 2
      %s37 = sadd.s32 %s30, 1
      %s39 = sadd.s32 %s38, 1
      %p42 = scmp.eq.s32.totalorder %s30, 1
      %p43 = scmp.ne.s32.totalorder %s38, %s40
      %p44 = scmp.eq.s32.totalorder %s30, 0
      %p45 = por %p43, %p44
      %p46 = scmp.ne.s32.totalorder %s38, %s40
      %p47 = scmp.eq.s32.totalorder %s35, 1
      %p48 = por %p46, %p47
      %p49 = scmp.ne.s32.totalorder %s40, %s41
      %p50 = scmp.eq.s32.totalorder %s35, 0
      %p51 = por %p49, %p50
      %p52 = scmp.ne.s32.totalorder %s40, %s41
      %p53 = scmp.eq.s32.totalorder %s36, 1
      %p54 = por %p52, %p53
      %p56 = scmp.ne.s32.totalorder %s41, %s55
      %p57 = scmp.eq.s32.totalorder %s36, 0
      %p58 = por %p56, %p57
      %s60 = sadd.s32 %s59, 1
      %p63 = scmp.eq.s32.totalorder %s30, 1
      %p64 = scmp.ne.s32.totalorder %s59, %s61
      %p65 = scmp.eq.s32.totalorder %s30, 0
      %p66 = por %p64, %p65
      %p67 = scmp.ne.s32.totalorder %s59, %s61
      %p68 = scmp.eq.s32.totalorder %s35, 1
      %p69 = por %p67, %p68
      %p70 = scmp.ne.s32.totalorder %s61, %s62
      %p71 = scmp.eq.s32.totalorder %s35, 0
      %p72 = por %p70, %p71
      %p73 = scmp.ne.s32.totalorder %s61, %s62
      %p74 = scmp.eq.s32.totalorder %s36, 1
      %p75 = por %p73, %p74
      %p77 = scmp.ne.s32.totalorder %s62, %s76
      %p78 = scmp.eq.s32.totalorder %s36, 0
      %p79 = por %p77, %p78
      %s80 = ssub.s32 %s30, %s37
      %p81 = scmp.eq.s32.totalorder %s80, 0
      %s83 = sadd.s32 %s82, 1
      %s84 = scalar_select %p81, %s82, %s83
      %p87 = pneg %p81
      %p88 = scmp.eq.s32.totalorder %s30, 1
      %p89 = por %p87, %p88
      %p90 = scmp.ne.s32.totalorder %s82, %s85
      %p91 = scmp.eq.s32.totalorder %s30, 0
      %p92 = por %p90, %p91
      %p93 = scmp.ne.s32.totalorder %s82, %s85
      %p94 = scmp.eq.s32.totalorder %s35, 1
      %p95 = por %p93, %p94
      %p96 = scmp.ne.s32.totalorder %s85, %s86
      %p97 = scmp.eq.s32.totalorder %s35, 0
      %p98 = por %p96, %p97
      %p99 = scmp.ne.s32.totalorder %s85, %s86
      %p100 = scmp.eq.s32.totalorder %s36, 1
      %p101 = por %p99, %p100
      %p103 = scmp.ne.s32.totalorder %s86, %s102
      %p104 = scmp.eq.s32.totalorder %s36, 0
      %p105 = por %p103, %p104
      %s106 = ssub.s32 %s30, %s37
      %p107 = scmp.eq.s32.totalorder %s106, 0
      %s109 = sadd.s32 %s108, 1
      %s110 = scalar_select %p107, %s108, %s109
      %p113 = pneg %p107
      %p114 = scmp.eq.s32.totalorder %s30, 1
      %p115 = por %p113, %p114
      %p116 = scmp.ne.s32.totalorder %s108, %s111
      %p117 = scmp.eq.s32.totalorder %s30, 0
      %p118 = por %p116, %p117
      %p119 = scmp.ne.s32.totalorder %s108, %s111
      %p120 = scmp.eq.s32.totalorder %s35, 1
      %p121 = por %p119, %p120
      %p122 = scmp.ne.s32.totalorder %s111, %s112
      %p123 = scmp.eq.s32.totalorder %s35, 0
      %p124 = por %p122, %p123
      %p125 = scmp.ne.s32.totalorder %s111, %s112
      %p126 = scmp.eq.s32.totalorder %s36, 1
      %p127 = por %p125, %p126
      %p129 = scmp.ne.s32.totalorder %s112, %s128
      %p130 = scmp.eq.s32.totalorder %s36, 0
      %p131 = por %p129, %p130
      %s132 = ssub.s32 %s30, %s37
      %p133 = scmp.eq.s32.totalorder %s132, 0
      %s135 = sadd.s32 %s134, 1
      %s136 = scalar_select %p133, %s134, %s135
      %p139 = pneg %p133
      %p140 = scmp.eq.s32.totalorder %s30, 1
      %p141 = por %p139, %p140
      %p142 = scmp.ne.s32.totalorder %s134, %s137
      %p143 = scmp.eq.s32.totalorder %s30, 0
      %p144 = por %p142, %p143
      %p145 = scmp.ne.s32.totalorder %s134, %s137
      %p146 = scmp.eq.s32.totalorder %s35, 1
      %p147 = por %p145, %p146
      %p148 = scmp.ne.s32.totalorder %s137, %s138
      %p149 = scmp.eq.s32.totalorder %s35, 0
      %p150 = por %p148, %p149
      %p151 = scmp.ne.s32.totalorder %s137, %s138
      %p152 = scmp.eq.s32.totalorder %s36, 1
      %p153 = por %p151, %p152
      %p155 = scmp.ne.s32.totalorder %s138, %s154
      %p156 = scmp.eq.s32.totalorder %s36, 0
      %p157 = por %p155, %p156
      %s158 = ssub.s32 %s30, %s37
      %p159 = scmp.eq.s32.totalorder %s158, 0
      %s161 = sadd.s32 %s160, 1
      %s162 = scalar_select %p159, %s160, %s161
      %p165 = pneg %p159
      %p166 = scmp.eq.s32.totalorder %s30, 1
      %p167 = por %p165, %p166
      %p168 = scmp.ne.s32.totalorder %s160, %s163
      %p169 = scmp.eq.s32.totalorder %s30, 0
      %p170 = por %p168, %p169
      %p171 = scmp.ne.s32.totalorder %s160, %s163
      %p172 = scmp.eq.s32.totalorder %s35, 1
      %p173 = por %p171, %p172
      %p174 = scmp.ne.s32.totalorder %s163, %s164
      %p175 = scmp.eq.s32.totalorder %s35, 0
      %p176 = por %p174, %p175
      %p177 = scmp.ne.s32.totalorder %s163, %s164
      %p178 = scmp.eq.s32.totalorder %s36, 1
      %p179 = por %p177, %p178
      %p181 = scmp.ne.s32.totalorder %s164, %s180
      %p182 = scmp.eq.s32.totalorder %s36, 0
      %p183 = por %p181, %p182
      %s184 = ssub.s32 %s30, %s37
      %p185 = scmp.eq.s32.totalorder %s184, 0
      %s187 = sadd.s32 %s186, 1
      %s188 = scalar_select %p185, %s186, %s187
      %p191 = pneg %p185
      %p192 = scmp.eq.s32.totalorder %s30, 1
      %p193 = por %p191, %p192
      %p194 = scmp.ne.s32.totalorder %s186, %s189
      %p195 = scmp.eq.s32.totalorder %s30, 0
      %p196 = por %p194, %p195
      %p197 = scmp.ne.s32.totalorder %s186, %s189
      %p198 = scmp.eq.s32.totalorder %s35, 1
      %p199 = por %p197, %p198
      %p200 = scmp.ne.s32.totalorder %s189, %s190
      %p201 = scmp.eq.s32.totalorder %s35, 0
      %p202 = por %p200, %p201
      %p203 = scmp.ne.s32.totalorder %s189, %s190
      %p204 = scmp.eq.s32.totalorder %s36, 1
      %p205 = por %p203, %p204
      %p207 = scmp.ne.s32.totalorder %s190, %s206
      %p208 = scmp.eq.s32.totalorder %s36, 0
      %p209 = por %p207, %p208
      %s210 = ssub.s32 %s30, %s37
      %p211 = scmp.eq.s32.totalorder %s210, 0
      %s213 = sadd.s32 %s212, 1
      %s214 = scalar_select %p211, %s212, %s213
      %p217 = pneg %p211
      %p218 = scmp.eq.s32.totalorder %s30, 1
      %p219 = por %p217, %p218
      %p220 = scmp.ne.s32.totalorder %s212, %s215
      %p221 = scmp.eq.s32.totalorder %s30, 0
      %p222 = por %p220, %p221
      %p223 = scmp.ne.s32.totalorder %s212, %s215
      %p224 = scmp.eq.s32.totalorder %s35, 1
      %p225 = por %p223, %p224
      %p226 = scmp.ne.s32.totalorder %s215, %s216
      %p227 = scmp.eq.s32.totalorder %s35, 0
      %p228 = por %p226, %p227
      %p229 = scmp.ne.s32.totalorder %s215, %s216
      %p230 = scmp.eq.s32.totalorder %s36, 1
      %p231 = por %p229, %p230
      %p233 = scmp.ne.s32.totalorder %s216, %s232
      %p234 = scmp.eq.s32.totalorder %s36, 0
      %p235 = por %p233, %p234
      %s236 = ssub.s32 %s30, %s37
      %p237 = scmp.eq.s32.totalorder %s236, 0
      %s239 = sadd.s32 %s238, 1
      %s240 = scalar_select %p237, %s238, %s239
      %p243 = pneg %p237
      %p244 = scmp.eq.s32.totalorder %s30, 1
      %p245 = por %p243, %p244
      %p246 = scmp.ne.s32.totalorder %s238, %s241
      %p247 = scmp.eq.s32.totalorder %s30, 0
      %p248 = por %p246, %p247
      %p249 = scmp.ne.s32.totalorder %s238, %s241
      %p250 = scmp.eq.s32.totalorder %s35, 1
      %p251 = por %p249, %p250
      %p252 = scmp.ne.s32.totalorder %s241, %s242
      %p253 = scmp.eq.s32.totalorder %s35, 0
      %p254 = por %p252, %p253
      %p255 = scmp.ne.s32.totalorder %s241, %s242
      %p256 = scmp.eq.s32.totalorder %s36, 1
      %p257 = por %p255, %p256
      %p259 = scmp.ne.s32.totalorder %s242, %s258
      %p260 = scmp.eq.s32.totalorder %s36, 0
      %p261 = por %p259, %p260
      %s262 = ssub.s32 %s30, %s37
      %p263 = scmp.eq.s32.totalorder %s262, 0
      %s265 = sadd.s32 %s264, 1
      %s266 = scalar_select %p263, %s264, %s265
      %p269 = pneg %p263
      %p270 = scmp.eq.s32.totalorder %s30, 1
      %p271 = por %p269, %p270
      %p272 = scmp.ne.s32.totalorder %s264, %s267
      %p273 = scmp.eq.s32.totalorder %s30, 0
      %p274 = por %p272, %p273
      %p275 = scmp.ne.s32.totalorder %s264, %s267
      %p276 = scmp.eq.s32.totalorder %s35, 1
      %p277 = por %p275, %p276
      %p278 = scmp.ne.s32.totalorder %s267, %s268
      %p279 = scmp.eq.s32.totalorder %s35, 0
      %p280 = por %p278, %p279
      %p281 = scmp.ne.s32.totalorder %s267, %s268
      %p282 = scmp.eq.s32.totalorder %s36, 1
      %p283 = por %p281, %p282
      %p285 = scmp.ne.s32.totalorder %s268, %s284
      %p286 = scmp.eq.s32.totalorder %s36, 0
      %p287 = por %p285, %p286
      %s288 = ssub.s32 %s30, %s37
      %p289 = scmp.eq.s32.totalorder %s288, 0
      %s291 = sadd.s32 %s290, 1
      %s292 = scalar_select %p289, %s290, %s291
      %p295 = pneg %p289
      %p296 = scmp.eq.s32.totalorder %s30, 1
      %p297 = por %p295, %p296
      %p298 = scmp.ne.s32.totalorder %s290, %s293
      %p299 = scmp.eq.s32.totalorder %s30, 0
      %p300 = por %p298, %p299
      %p301 = scmp.ne.s32.totalorder %s290, %s293
      %p302 = scmp.eq.s32.totalorder %s35, 1
      %p303 = por %p301, %p302
      %p304 = scmp.ne.s32.totalorder %s293, %s294
      %p305 = scmp.eq.s32.totalorder %s35, 0
      %p306 = por %p304, %p305
      %p307 = scmp.ne.s32.totalorder %s293, %s294
      %p308 = scmp.eq.s32.totalorder %s36, 1
      %p309 = por %p307, %p308
      %p311 = scmp.ne.s32.totalorder %s294, %s310
      %p312 = scmp.eq.s32.totalorder %s36, 0
      %p313 = por %p311, %p312
      %s314 = ssub.s32 %s30, %s37
      %p315 = scmp.eq.s32.totalorder %s314, 0
      %s317 = sadd.s32 %s316, 1
      %s318 = scalar_select %p315, %s316, %s317
      %p321 = pneg %p315
      %p322 = scmp.eq.s32.totalorder %s30, 1
      %p323 = por %p321, %p322
      %p324 = scmp.ne.s32.totalorder %s316, %s319
      %p325 = scmp.eq.s32.totalorder %s30, 0
      %p326 = por %p324, %p325
      %p327 = scmp.ne.s32.totalorder %s316, %s319
      %p328 = scmp.eq.s32.totalorder %s35, 1
      %p329 = por %p327, %p328
      %p330 = scmp.ne.s32.totalorder %s319, %s320
      %p331 = scmp.eq.s32.totalorder %s35, 0
      %p332 = por %p330, %p331
      %p333 = scmp.ne.s32.totalorder %s319, %s320
      %p334 = scmp.eq.s32.totalorder %s36, 1
      %p335 = por %p333, %p334
      %p337 = scmp.ne.s32.totalorder %s320, %s336
      %p338 = scmp.eq.s32.totalorder %s36, 0
      %p339 = por %p337, %p338
      %s340 = ssub.s32 %s30, %s37
      %p341 = scmp.eq.s32.totalorder %s340, 0
      %s343 = sadd.s32 %s342, 1
      %s344 = scalar_select %p341, %s342, %s343
      %p347 = pneg %p341
      %p348 = scmp.eq.s32.totalorder %s30, 1
      %p349 = por %p347, %p348
      %p350 = scmp.ne.s32.totalorder %s342, %s345
      %p351 = scmp.eq.s32.totalorder %s30, 0
      %p352 = por %p350, %p351
      %p353 = scmp.ne.s32.totalorder %s342, %s345
      %p354 = scmp.eq.s32.totalorder %s35, 1
      %p355 = por %p353, %p354
      %p356 = scmp.ne.s32.totalorder %s345, %s346
      %p357 = scmp.eq.s32.totalorder %s35, 0
      %p358 = por %p356, %p357
      %p359 = scmp.ne.s32.totalorder %s345, %s346
      %p360 = scmp.eq.s32.totalorder %s36, 1
      %p361 = por %p359, %p360
      %p363 = scmp.ne.s32.totalorder %s346, %s362
      %p364 = scmp.eq.s32.totalorder %s36, 0
      %p365 = por %p363, %p364
      %s366 = ssub.s32 %s30, %s37
      %p367 = scmp.eq.s32.totalorder %s366, 0
      %s369 = sadd.s32 %s368, 1
      %s370 = scalar_select %p367, %s368, %s369
      %p373 = pneg %p367
      %p374 = scmp.eq.s32.totalorder %s30, 1
      %p375 = por %p373, %p374
      %p376 = scmp.ne.s32.totalorder %s368, %s371
      %p377 = scmp.eq.s32.totalorder %s30, 0
      %p378 = por %p376, %p377
      %p379 = scmp.ne.s32.totalorder %s368, %s371
      %p380 = scmp.eq.s32.totalorder %s35, 1
      %p381 = por %p379, %p380
      %p382 = scmp.ne.s32.totalorder %s371, %s372
      %p383 = scmp.eq.s32.totalorder %s35, 0
      %p384 = por %p382, %p383
      %p385 = scmp.ne.s32.totalorder %s371, %s372
      %p386 = scmp.eq.s32.totalorder %s36, 1
      %p387 = por %p385, %p386
      %p389 = scmp.ne.s32.totalorder %s372, %s388
      %p390 = scmp.eq.s32.totalorder %s36, 0
      %p391 = por %p389, %p390
      %s393 = sadd.s32 %s392, 1
      %p396 = scmp.eq.s32.totalorder %s30, 1
      %p397 = scmp.ne.s32.totalorder %s392, %s394
      %p398 = scmp.eq.s32.totalorder %s30, 0
      %p399 = por %p397, %p398
      %p400 = scmp.ne.s32.totalorder %s392, %s394
      %p401 = scmp.eq.s32.totalorder %s35, 1
      %p402 = por %p400, %p401
      %p403 = scmp.ne.s32.totalorder %s394, %s395
      %p404 = scmp.eq.s32.totalorder %s35, 0
      %p405 = por %p403, %p404
      %p406 = scmp.ne.s32.totalorder %s394, %s395
      %p407 = scmp.eq.s32.totalorder %s36, 1
      %p408 = por %p406, %p407
      %p410 = scmp.ne.s32.totalorder %s395, %s409
      %p411 = scmp.eq.s32.totalorder %s36, 0
      %p412 = por %p410, %p411
      %s414 = sadd.s32 %s413, 1
      %p417 = scmp.eq.s32.totalorder %s30, 1
      %p418 = scmp.ne.s32.totalorder %s413, %s415
      %p419 = scmp.eq.s32.totalorder %s30, 0
      %p420 = por %p418, %p419
      %p421 = scmp.ne.s32.totalorder %s413, %s415
      %p422 = scmp.eq.s32.totalorder %s35, 1
      %p423 = por %p421, %p422
      %p424 = scmp.ne.s32.totalorder %s415, %s416
      %p425 = scmp.eq.s32.totalorder %s35, 0
      %p426 = por %p424, %p425
      %p427 = scmp.ne.s32.totalorder %s415, %s416
      %p428 = scmp.eq.s32.totalorder %s36, 1
      %p429 = por %p427, %p428
      %p431 = scmp.ne.s32.totalorder %s416, %s430
      %p432 = scmp.eq.s32.totalorder %s36, 0
      %p433 = por %p431, %p432
      %s435 = sadd.s32 %s434, 1
      %p438 = scmp.eq.s32.totalorder %s30, 1
      %p439 = scmp.ne.s32.totalorder %s434, %s436
      %p440 = scmp.eq.s32.totalorder %s30, 0
      %p441 = por %p439, %p440
      %p442 = scmp.ne.s32.totalorder %s434, %s436
      %p443 = scmp.eq.s32.totalorder %s35, 1
      %p444 = por %p442, %p443
      %p445 = scmp.ne.s32.totalorder %s436, %s437
      %p446 = scmp.eq.s32.totalorder %s35, 0
      %p447 = por %p445, %p446
      %p448 = scmp.ne.s32.totalorder %s436, %s437
      %p449 = scmp.eq.s32.totalorder %s36, 1
      %p450 = por %p448, %p449
      %p452 = scmp.ne.s32.totalorder %s437, %s451
      %p453 = scmp.eq.s32.totalorder %s36, 0
      %p454 = por %p452, %p453
      %s456 = sadd.s32 %s455, 1
      %p459 = scmp.eq.s32.totalorder %s30, 1
      %p460 = scmp.ne.s32.totalorder %s455, %s457
      %p461 = scmp.eq.s32.totalorder %s30, 0
      %p462 = por %p460, %p461
      %p463 = scmp.ne.s32.totalorder %s455, %s457
      %p464 = scmp.eq.s32.totalorder %s35, 1
      %p465 = por %p463, %p464
      %p466 = scmp.ne.s32.totalorder %s457, %s458
      %p467 = scmp.eq.s32.totalorder %s35, 0
      %p468 = por %p466, %p467
      %p469 = scmp.ne.s32.totalorder %s457, %s458
      %p470 = scmp.eq.s32.totalorder %s36, 1
      %p471 = por %p469, %p470
      %p473 = scmp.ne.s32.totalorder %s458, %s472
      %p474 = scmp.eq.s32.totalorder %s36, 0
      %p475 = por %p473, %p474
      %s477 = sadd.s32 %s476, 1
      %p480 = scmp.eq.s32.totalorder %s30, 1
      %p481 = scmp.ne.s32.totalorder %s476, %s478
      %p482 = scmp.eq.s32.totalorder %s30, 0
      %p483 = por %p481, %p482
      %p484 = scmp.ne.s32.totalorder %s476, %s478
      %p485 = scmp.eq.s32.totalorder %s35, 1
      %p486 = por %p484, %p485
      %p487 = scmp.ne.s32.totalorder %s478, %s479
      %p488 = scmp.eq.s32.totalorder %s35, 0
      %p489 = por %p487, %p488
      %p490 = scmp.ne.s32.totalorder %s478, %s479
      %p491 = scmp.eq.s32.totalorder %s36, 1
      %p492 = por %p490, %p491
      %p494 = scmp.ne.s32.totalorder %s479, %s493
      %p495 = scmp.eq.s32.totalorder %s36, 0
      %p496 = por %p494, %p495
      %s498 = sadd.s32 %s497, 1
      %p501 = scmp.eq.s32.totalorder %s30, 1
      %p502 = scmp.ne.s32.totalorder %s497, %s499
      %p503 = scmp.eq.s32.totalorder %s30, 0
      %p504 = por %p502, %p503
      %p505 = scmp.ne.s32.totalorder %s497, %s499
      %p506 = scmp.eq.s32.totalorder %s35, 1
      %p507 = por %p505, %p506
      %p508 = scmp.ne.s32.totalorder %s499, %s500
      %p509 = scmp.eq.s32.totalorder %s35, 0
      %p510 = por %p508, %p509
      %p511 = scmp.ne.s32.totalorder %s499, %s500
      %p512 = scmp.eq.s32.totalorder %s36, 1
      %p513 = por %p511, %p512
      %p515 = scmp.ne.s32.totalorder %s500, %s514
      %p516 = scmp.eq.s32.totalorder %s36, 0
      %p517 = por %p515, %p516
      %s519 = sadd.s32 %s518, 1
      %p522 = scmp.eq.s32.totalorder %s30, 1
      %p523 = scmp.ne.s32.totalorder %s518, %s520
      %p524 = scmp.eq.s32.totalorder %s30, 0
      %p525 = por %p523, %p524
      %p526 = scmp.ne.s32.totalorder %s518, %s520
      %p527 = scmp.eq.s32.totalorder %s35, 1
      %p528 = por %p526, %p527
      %p529 = scmp.ne.s32.totalorder %s520, %s521
      %p530 = scmp.eq.s32.totalorder %s35, 0
      %p531 = por %p529, %p530
      %p532 = scmp.ne.s32.totalorder %s520, %s521
      %p533 = scmp.eq.s32.totalorder %s36, 1
      %p534 = por %p532, %p533
      %p536 = scmp.ne.s32.totalorder %s521, %s535
      %p537 = scmp.eq.s32.totalorder %s36, 0
      %p538 = por %p536, %p537
      %s540 = sadd.s32 %s539, 1
      %p543 = scmp.eq.s32.totalorder %s30, 1
      %p544 = scmp.ne.s32.totalorder %s539, %s541
      %p545 = scmp.eq.s32.totalorder %s30, 0
      %p546 = por %p544, %p545
      %p547 = scmp.ne.s32.totalorder %s539, %s541
      %p548 = scmp.eq.s32.totalorder %s35, 1
      %p549 = por %p547, %p548
      %p550 = scmp.ne.s32.totalorder %s541, %s542
      %p551 = scmp.eq.s32.totalorder %s35, 0
      %p552 = por %p550, %p551
      %p553 = scmp.ne.s32.totalorder %s541, %s542
      %p554 = scmp.eq.s32.totalorder %s36, 1
      %p555 = por %p553, %p554
      %p557 = scmp.ne.s32.totalorder %s542, %s556
      %p558 = scmp.eq.s32.totalorder %s36, 0
      %p559 = por %p557, %p558
      %p560 = scmp.le.s32.totalorder 1, %s30
      %p561 = scmp.lt.s32.totalorder %s30, 3
      %p562 = pnand %p560, %p561
      %p563 = pneg %p562
      // Predicated region
      $region9: #{embedding_transformer_forward.1} parent=5 // pred_check
        _
      $region10: #{embedding_transformer_forward.1} parent=5 // pred_check_branch
        %565 = sbr.rel (%p562) target = $region12
      $region11: #{embedding_transformer_forward.1} parent=5 // pred_region
        %s566 = ssub.s32 %s30, 1
        // Predicated region
        $region13: #{embedding_transformer_forward.1} parent=11 // pred_check
          %p567 = pneg %p51
        $region14: #{embedding_transformer_forward.1} parent=11 // pred_check_branch
          %569 = sbr.rel (%p567) target = $region16
        $region15: #{embedding_transformer_forward.1} parent=11 // pred_region
          _
        $region16: #{embedding_transformer_forward.1} parent=11 // pred_fallthru
          _
        // Predicated region
        $region17: #{embedding_transformer_forward.1} parent=11 // pred_check
          %p570 = pneg %p72
        $region18: #{embedding_transformer_forward.1} parent=11 // pred_check_branch
          %572 = sbr.rel (%p570) target = $region20
        $region19: #{embedding_transformer_forward.1} parent=11 // pred_region
          _
        $region20: #{embedding_transformer_forward.1} parent=11 // pred_fallthru
          _
        // Predicated region
        $region21: #{embedding_transformer_forward.1} parent=11 // pred_check
          %p573 = pneg %p405
        $region22: #{embedding_transformer_forward.1} parent=11 // pred_check_branch
          %575 = sbr.rel (%p573) target = $region24
        $region23: #{embedding_transformer_forward.1} parent=11 // pred_region
          _
        $region24: #{embedding_transformer_forward.1} parent=11 // pred_fallthru
          _
        // Predicated region
        $region25: #{embedding_transformer_forward.1} parent=11 // pred_check
          %p576 = pneg %p426
        $region26: #{embedding_transformer_forward.1} parent=11 // pred_check_branch
          %578 = sbr.rel (%p576) target = $region28
        $region27: #{embedding_transformer_forward.1} parent=11 // pred_region
          _
        $region28: #{embedding_transformer_forward.1} parent=11 // pred_fallthru
          _
        // Predicated region
        $region29: #{embedding_transformer_forward.1} parent=11 // pred_check
          %p579 = pneg %p447
        $region30: #{embedding_transformer_forward.1} parent=11 // pred_check_branch
          %581 = sbr.rel (%p579) target = $region32
        $region31: #{embedding_transformer_forward.1} parent=11 // pred_region
          _
        $region32: #{embedding_transformer_forward.1} parent=11 // pred_fallthru
          _
        // Predicated region
        $region33: #{embedding_transformer_forward.1} parent=11 // pred_check
          %p582 = pneg %p468
        $region34: #{embedding_transformer_forward.1} parent=11 // pred_check_branch
          %584 = sbr.rel (%p582) target = $region36
        $region35: #{embedding_transformer_forward.1} parent=11 // pred_region
          _
        $region36: #{embedding_transformer_forward.1} parent=11 // pred_fallthru
          _
        // Predicated region
        $region37: #{embedding_transformer_forward.1} parent=11 // pred_check
          %p585 = pneg %p489
        $region38: #{embedding_transformer_forward.1} parent=11 // pred_check_branch
          %587 = sbr.rel (%p585) target = $region40
        $region39: #{embedding_transformer_forward.1} parent=11 // pred_region
          _
        $region40: #{embedding_transformer_forward.1} parent=11 // pred_fallthru
          _
        // Predicated region
        $region41: #{embedding_transformer_forward.1} parent=11 // pred_check
          %p588 = pneg %p510
        $region42: #{embedding_transformer_forward.1} parent=11 // pred_check_branch
          %590 = sbr.rel (%p588) target = $region44
        $region43: #{embedding_transformer_forward.1} parent=11 // pred_region
          _
        $region44: #{embedding_transformer_forward.1} parent=11 // pred_fallthru
          _
      $region12: #{embedding_transformer_forward.1} parent=5 // pred_fallthru
        _
      %p591 = scmp.lt.s32.totalorder %s30, 2
      // Predicated region
      $region45: #{embedding_transformer_forward.1} parent=5 // pred_check
        %p592 = pneg %p591
      $region46: #{embedding_transformer_forward.1} parent=5 // pred_check_branch
        %594 = sbr.rel (%p592) target = $region48
      $region47: #{embedding_transformer_forward.1} parent=5 // pred_region
        // Predicated region
        $region49: #{embedding_transformer_forward.1} parent=47 // pred_check
          %p595 = pneg %p92
        $region50: #{embedding_transformer_forward.1} parent=47 // pred_check_branch
          %597 = sbr.rel (%p595) target = $region52
        $region51: #{embedding_transformer_forward.1} parent=47 // pred_region
          %p598 = scmp.lt.s32.totalorder %s30, 1
          %s599 = scalar_select %p598, %s30, 1
          %s600 = smul.addr %s599, 4
          %s601 = smul.addr %s600, 4
          %s602 = scalar_lea.vmem %s2, %s601
        $region52: #{embedding_transformer_forward.1} parent=47 // pred_fallthru
          _
        // Predicated region
        $region53: #{embedding_transformer_forward.1} parent=47 // pred_check
          %p603 = pneg %p118
        $region54: #{embedding_transformer_forward.1} parent=47 // pred_check_branch
          %605 = sbr.rel (%p603) target = $region56
        $region55: #{embedding_transformer_forward.1} parent=47 // pred_region
          %p606 = scmp.lt.s32.totalorder %s30, 1
          %s607 = scalar_select %p606, %s30, 1
          %s608 = scalar_lea.vmem %s3, %s607
        $region56: #{embedding_transformer_forward.1} parent=47 // pred_fallthru
          _
        // Predicated region
        $region57: #{embedding_transformer_forward.1} parent=47 // pred_check
          %p609 = pneg %p144
        $region58: #{embedding_transformer_forward.1} parent=47 // pred_check_branch
          %611 = sbr.rel (%p609) target = $region60
        $region59: #{embedding_transformer_forward.1} parent=47 // pred_region
          %p612 = scmp.lt.s32.totalorder %s30, 1
          %s613 = scalar_select %p612, %s30, 1
          %s614 = smul.addr %s613, 4
          %s615 = smul.addr %s614, 4
          %s616 = scalar_lea.vmem %s4, %s615
        $region60: #{embedding_transformer_forward.1} parent=47 // pred_fallthru
          _
        // Predicated region
        $region61: #{embedding_transformer_forward.1} parent=47 // pred_check
          %p617 = pneg %p170
        $region62: #{embedding_transformer_forward.1} parent=47 // pred_check_branch
          %619 = sbr.rel (%p617) target = $region64
        $region63: #{embedding_transformer_forward.1} parent=47 // pred_region
          %p620 = scmp.lt.s32.totalorder %s30, 1
          %s621 = scalar_select %p620, %s30, 1
          %s622 = scalar_lea.vmem %s5, %s621
        $region64: #{embedding_transformer_forward.1} parent=47 // pred_fallthru
          _
        // Predicated region
        $region65: #{embedding_transformer_forward.1} parent=47 // pred_check
          %p623 = pneg %p196
        $region66: #{embedding_transformer_forward.1} parent=47 // pred_check_branch
          %625 = sbr.rel (%p623) target = $region68
        $region67: #{embedding_transformer_forward.1} parent=47 // pred_region
          %p626 = scmp.lt.s32.totalorder %s30, 1
          %s627 = scalar_select %p626, %s30, 1
          %s628 = scalar_lea.vmem %s6, %s627
        $region68: #{embedding_transformer_forward.1} parent=47 // pred_fallthru
          _
        // Predicated region
        $region69: #{embedding_transformer_forward.1} parent=47 // pred_check
          %p629 = pneg %p222
        $region70: #{embedding_transformer_forward.1} parent=47 // pred_check_branch
          %631 = sbr.rel (%p629) target = $region72
        $region71: #{embedding_transformer_forward.1} parent=47 // pred_region
          %p632 = scmp.lt.s32.totalorder %s30, 1
          %s633 = scalar_select %p632, %s30, 1
          %s634 = scalar_lea.vmem %s7, %s633
        $region72: #{embedding_transformer_forward.1} parent=47 // pred_fallthru
          _
        // Predicated region
        $region73: #{embedding_transformer_forward.1} parent=47 // pred_check
          %p635 = pneg %p248
        $region74: #{embedding_transformer_forward.1} parent=47 // pred_check_branch
          %637 = sbr.rel (%p635) target = $region76
        $region75: #{embedding_transformer_forward.1} parent=47 // pred_region
          %p638 = scmp.lt.s32.totalorder %s30, 1
          %s639 = scalar_select %p638, %s30, 1
          %s640 = smul.addr %s639, 4
          %s641 = smul.addr %s640, 4
          %s642 = scalar_lea.vmem %s8, %s641
        $region76: #{embedding_transformer_forward.1} parent=47 // pred_fallthru
          _
        // Predicated region
        $region77: #{embedding_transformer_forward.1} parent=47 // pred_check
          %p643 = pneg %p274
        $region78: #{embedding_transformer_forward.1} parent=47 // pred_check_branch
          %645 = sbr.rel (%p643) target = $region80
        $region79: #{embedding_transformer_forward.1} parent=47 // pred_region
          %p646 = scmp.lt.s32.totalorder %s30, 1
          %s647 = scalar_select %p646, %s30, 1
          %s648 = scalar_lea.vmem %s9, %s647
        $region80: #{embedding_transformer_forward.1} parent=47 // pred_fallthru
          _
        // Predicated region
        $region81: #{embedding_transformer_forward.1} parent=47 // pred_check
          %p649 = pneg %p300
        $region82: #{embedding_transformer_forward.1} parent=47 // pred_check_branch
          %651 = sbr.rel (%p649) target = $region84
        $region83: #{embedding_transformer_forward.1} parent=47 // pred_region
          %p652 = scmp.lt.s32.totalorder %s30, 1
          %s653 = scalar_select %p652, %s30, 1
          %s654 = smul.addr %s653, 8
          %s655 = smul.addr %s654, 4
          %s656 = scalar_lea.vmem %s10, %s655
        $region84: #{embedding_transformer_forward.1} parent=47 // pred_fallthru
          _
        // Predicated region
        $region85: #{embedding_transformer_forward.1} parent=47 // pred_check
          %p657 = pneg %p326
        $region86: #{embedding_transformer_forward.1} parent=47 // pred_check_branch
          %659 = sbr.rel (%p657) target = $region88
        $region87: #{embedding_transformer_forward.1} parent=47 // pred_region
          %p660 = scmp.lt.s32.totalorder %s30, 1
          %s661 = scalar_select %p660, %s30, 1
          %s662 = scalar_lea.vmem %s11, %s661
        $region88: #{embedding_transformer_forward.1} parent=47 // pred_fallthru
          _
        // Predicated region
        $region89: #{embedding_transformer_forward.1} parent=47 // pred_check
          %p663 = pneg %p352
        $region90: #{embedding_transformer_forward.1} parent=47 // pred_check_branch
          %665 = sbr.rel (%p663) target = $region92
        $region91: #{embedding_transformer_forward.1} parent=47 // pred_region
          %p666 = scmp.lt.s32.totalorder %s30, 1
          %s667 = scalar_select %p666, %s30, 1
          %s668 = scalar_lea.vmem %s12, %s667
        $region92: #{embedding_transformer_forward.1} parent=47 // pred_fallthru
          _
        // Predicated region
        $region93: #{embedding_transformer_forward.1} parent=47 // pred_check
          %p669 = pneg %p378
        $region94: #{embedding_transformer_forward.1} parent=47 // pred_check_branch
          %671 = sbr.rel (%p669) target = $region96
        $region95: #{embedding_transformer_forward.1} parent=47 // pred_region
          %p672 = scmp.lt.s32.totalorder %s30, 1
          %s673 = scalar_select %p672, %s30, 1
          %s674 = scalar_lea.vmem %s13, %s673
        $region96: #{embedding_transformer_forward.1} parent=47 // pred_fallthru
          _
      $region48: #{embedding_transformer_forward.1} parent=5 // pred_fallthru
        _
      %p675 = scmp.le.s32.totalorder 1, %s30
      %p676 = scmp.lt.s32.totalorder %s30, 3
      %p677 = pnand %p675, %p676
      %p678 = pneg %p677
      // Predicated region
      $region97: #{embedding_transformer_forward.1} parent=5 // pred_check
        _
      $region98: #{embedding_transformer_forward.1} parent=5 // pred_check_branch
        %680 = sbr.rel (%p677) target = $region100
      $region99: #{embedding_transformer_forward.1} parent=5 // pred_region
        %s681 = ssub.s32 %s30, 1
        %p682 = pneg %p51
        %p683 = pneg %p48
        %p684 = pneg %p72
        %p685 = pneg %p69
        %p686 = scmp.lt.s32.totalorder %s35, 1
        %s687 = scalar_select %p686, %s35, 1
        %s688 = smul.addr %s687, 4
        %s689 = smul.addr %s688, 4
        %s690 = scalar_lea.vmem %s2, %s689
        %p691 = pneg %p98
        %p692 = pneg %p95
        %p693 = scmp.lt.s32.totalorder %s35, 1
        %s694 = scalar_select %p693, %s35, 1
        %s695 = scalar_lea.vmem %s3, %s694
        %p696 = pneg %p124
        %p697 = pneg %p121
        %p698 = scmp.lt.s32.totalorder %s35, 1
        %s699 = scalar_select %p698, %s35, 1
        %s700 = smul.addr %s699, 4
        %s701 = smul.addr %s700, 4
        %s702 = scalar_lea.vmem %s4, %s701
        %p703 = pneg %p150
        %p704 = pneg %p147
        %p705 = scmp.lt.s32.totalorder %s35, 1
        %s706 = scalar_select %p705, %s35, 1
        %s707 = scalar_lea.vmem %s5, %s706
        %p708 = pneg %p176
        %p709 = pneg %p173
        %p710 = scmp.lt.s32.totalorder %s35, 1
        %s711 = scalar_select %p710, %s35, 1
        %s712 = scalar_lea.vmem %s6, %s711
        %p713 = pneg %p202
        %p714 = pneg %p199
        %p715 = scmp.lt.s32.totalorder %s35, 1
        %s716 = scalar_select %p715, %s35, 1
        %s717 = scalar_lea.vmem %s7, %s716
        %p718 = pneg %p228
        %p719 = pneg %p225
        %p720 = scmp.lt.s32.totalorder %s35, 1
        %s721 = scalar_select %p720, %s35, 1
        %s722 = smul.addr %s721, 4
        %s723 = smul.addr %s722, 4
        %s724 = scalar_lea.vmem %s8, %s723
        %p725 = pneg %p254
        %p726 = pneg %p251
        %p727 = scmp.lt.s32.totalorder %s35, 1
        %s728 = scalar_select %p727, %s35, 1
        %s729 = scalar_lea.vmem %s9, %s728
        %p730 = pneg %p280
        %p731 = pneg %p277
        %p732 = scmp.lt.s32.totalorder %s35, 1
        %s733 = scalar_select %p732, %s35, 1
        %s734 = smul.addr %s733, 8
        %s735 = smul.addr %s734, 4
        %s736 = scalar_lea.vmem %s10, %s735
        %p737 = pneg %p306
        %p738 = pneg %p303
        %p739 = scmp.lt.s32.totalorder %s35, 1
        %s740 = scalar_select %p739, %s35, 1
        %s741 = scalar_lea.vmem %s11, %s740
        %p742 = pneg %p332
        %p743 = pneg %p329
        %p744 = scmp.lt.s32.totalorder %s35, 1
        %s745 = scalar_select %p744, %s35, 1
        %s746 = scalar_lea.vmem %s12, %s745
        %p747 = pneg %p358
        %p748 = pneg %p355
        %p749 = scmp.lt.s32.totalorder %s35, 1
        %s750 = scalar_select %p749, %s35, 1
        %s751 = scalar_lea.vmem %s13, %s750
        %p752 = pneg %p384
        %p753 = pneg %p381
        %p754 = pneg %p405
        %p755 = pneg %p402
        %p756 = pneg %p426
        %p757 = pneg %p423
        %p758 = pneg %p447
        %p759 = pneg %p444
        %p760 = pneg %p468
        %p761 = pneg %p465
        %p762 = pneg %p489
        %p763 = pneg %p486
        %p764 = pneg %p510
        %p765 = pneg %p507
        %p766 = pneg %p531
        %p767 = pneg %p528
        %p768 = pneg %p552
        %p769 = pneg %p549
        %p770 = scmp.lt.s32.totalorder %s35, 1
        %s771 = scalar_select %p770, %s35, 1
        %s772 = smul.addr %s771, 4
        %s773 = smul.addr %s772, 4
        %s774 = scalar_lea.vmem %s2, %s773
        %p775 = scmp.lt.s32.totalorder %s35, 1
        %s776 = scalar_select %p775, %s35, 1
        %s777 = scalar_lea.vmem %s3, %s776
        %p778 = scmp.lt.s32.totalorder %s35, 1
        %s779 = scalar_select %p778, %s35, 1
        %s780 = smul.addr %s779, 4
        %s781 = smul.addr %s780, 4
        %s782 = scalar_lea.vmem %s4, %s781
        %p783 = scmp.lt.s32.totalorder %s35, 1
        %s784 = scalar_select %p783, %s35, 1
        %s785 = scalar_lea.vmem %s5, %s784
        %p786 = scmp.lt.s32.totalorder %s35, 1
        %s787 = scalar_select %p786, %s35, 1
        %s788 = scalar_lea.vmem %s6, %s787
        %p789 = scmp.lt.s32.totalorder %s35, 1
        %s790 = scalar_select %p789, %s35, 1
        %s791 = scalar_lea.vmem %s7, %s790
        %p792 = scmp.lt.s32.totalorder %s35, 1
        %s793 = scalar_select %p792, %s35, 1
        %s794 = smul.addr %s793, 4
        %s795 = smul.addr %s794, 4
        %s796 = scalar_lea.vmem %s8, %s795
        %p797 = scmp.lt.s32.totalorder %s35, 1
        %s798 = scalar_select %p797, %s35, 1
        %s799 = scalar_lea.vmem %s9, %s798
        %p800 = scmp.lt.s32.totalorder %s35, 1
        %s801 = scalar_select %p800, %s35, 1
        %s802 = smul.addr %s801, 8
        %s803 = smul.addr %s802, 4
        %s804 = scalar_lea.vmem %s10, %s803
        %p805 = scmp.lt.s32.totalorder %s35, 1
        %s806 = scalar_select %p805, %s35, 1
        %s807 = scalar_lea.vmem %s11, %s806
        %p808 = scmp.lt.s32.totalorder %s35, 1
        %s809 = scalar_select %p808, %s35, 1
        %s810 = scalar_lea.vmem %s12, %s809
        %p811 = scmp.lt.s32.totalorder %s35, 1
        %s812 = scalar_select %p811, %s35, 1
        %s813 = scalar_lea.vmem %s13, %s812
        %p815 = scmp.eq.s32.totalorder %s35, 0
        // Predicated region
        $region101: #{embedding_transformer_forward.1} parent=99 // pred_check
          %p816 = pneg %p815
        $region102: #{embedding_transformer_forward.1} parent=99 // pred_check_branch
          %818 = sbr.rel (%p816) target = $region104
        $region103: #{embedding_transformer_forward.1} parent=99 // pred_region
          %v819 = vld [vmem:[%s0] sm:$0xff]
          %v820 = vld [vmem:[%s0 + $0x8] sm:$0xff]
          %vm821 = vcmask 261120
          %822 = vst.msk [vmem:[#allocation2] sm:$0xff] %vm821, %v819
          %823 = vst.msk [vmem:[#allocation2 + $0x8] sm:$0xff] %vm821, %v820
        $region104: #{embedding_transformer_forward.1} parent=99 // pred_fallthru
          _
        %v824 = vld [vmem:[#allocation2] sm:$0xff]
        %v825 = vld [vmem:[#allocation2 + $0x8] sm:$0xff]
        %v826 = vpack.c.bf16 %v825, %v824
        %v827 = vld [vmem:[%s774] sm:$0xf]
        %v828 = vld [vmem:[%s774 + $0x4] sm:$0xf]
        %v829 = vld [vmem:[%s774 + $0x8] sm:$0xf]
        %v830 = vld [vmem:[%s774 + $0xc] sm:$0xf]
        %v831 = vld [vmem:[%s777] sm:$0x1]
        %v833 = vlaneseq
        %v834 = vshrl.u32 %v833, 7
        %v835 = vsub.s32 0, %v834
        %v836 = vrot.slane %v831, %v835
        %v842 = vunpack.c.l.b16 %v827
        %v843 = vunpack.c.l.b16 %v828
        %v844 = vunpack.c.l.b16 %v829
        %v845 = vunpack.c.l.b16 %v830
        %v846 = vpack.c.b16 %v843, %v842
        %v847 = vpack.c.b16 %v845, %v844
        %vm850 = vcmask 261120
        %v852 = vsel %vm850, %v826, 0
        %854 = vmatprep.subr.bf16.mxu0 0
        %855 = vmatpush1.bf16.msra.mxu0 %v846
        %856 = vmatprep.subr.bf16.mxu0 0
        %857 = vmatpush1.bf16.msra.mxu0 %v847
        %858 = vmatprep.subr.bf16.mxu0 0
        %859 = vmatpush1.bf16.msra.mxu0 0
        %860 = vmatprep.subr.bf16.mxu0 0
        %861 = vmatpush1.bf16.msra.mxu0 0
        %862 = vmatprep.subr.bf16.mxu0 0
        %863 = vmatpush1.bf16.msra.mxu0 0
        %864 = vmatprep.subr.bf16.mxu0 0
        %865 = vmatpush1.bf16.msra.mxu0 0
        %866 = vmatprep.subr.bf16.mxu0 0
        %867 = vmatpush1.bf16.msra.mxu0 0
        %868 = vmatprep.subr.bf16.mxu0 0
        %869 = vmatpush1.bf16.msra.mxu0 0
        %870 = vmatprep.subr.bf16.mxu0 0
        %871 = vmatpush1.bf16.msra.mxu0 0
        %872 = vmatprep.subr.bf16.mxu0 0
        %873 = vmatpush1.bf16.msra.mxu0 0
        %874 = vmatprep.subr.bf16.mxu0 0
        %875 = vmatpush1.bf16.msra.mxu0 0
        %876 = vmatprep.subr.bf16.mxu0 0
        %877 = vmatpush1.bf16.msra.mxu0 0
        %878 = vmatprep.subr.bf16.mxu0 0
        %879 = vmatpush1.bf16.msra.mxu0 0
        %880 = vmatprep.subr.bf16.mxu0 0
        %881 = vmatpush1.bf16.msra.mxu0 0
        %882 = vmatprep.subr.bf16.mxu0 0
        %883 = vmatpush1.bf16.msra.mxu0 0
        %884 = vmatprep.subr.bf16.mxu0 0
        %885 = vmatpush1.bf16.msra.mxu0 0
        %886 = vmatprep.mubr.bf16.mxu0 0
        %887 = vmatmul.mubr.bf16.gmra.mrb[0].mxu0 %v852
        %v888 = vpop.f32.mrb[0].mxu0
        %v889 = vadd.f32 %v836, %v888
        %v890 = vpop.f32.mrb[0].mxu0
        %v891 = vpop.f32.mrb[0].mxu0
        %v892 = vadd.f32 %v836, %v891
        %v893 = vpop.f32.mrb[0].mxu0
        %894 = vdwg.mxu0
        %v895 = vld [vmem:[%s1] sm:$0x1]
        %v896 = vld [vmem:[%s1 + $0x1] sm:$0x1]
        %v899 = vlaneseq
        %v900 = vshrl.u32 %v899, 7
        %v901 = vsub.s32 0, %v900
        %v902 = vrot.slane %v895, %v901
        %v903 = vlaneseq
        %v904 = vshrl.u32 %v903, 7
        %v905 = vsub.s32 0, %v904
        %v906 = vrot.slane %v896, %v905
        %v909 = vpack.c.bf16 %v889, %v889
        %v910 = vpack.c.bf16 %v892, %v892
        %912 = vrot.lane.b32.xlu0 %v909, 96
        %v913 = vpop.permute.xlu0 %912
        %vm914 = vcmask 64512
        %v916 = vsel %vm914, %v909, 0
        %v919 = vsel %vm914, %v913, 0
        %921 = vmatprep.subr.bf16.mxu0 0
        %922 = vmatpush1.bf16.xpose.msra.mxu0 %v919
        %923 = vmatprep.subr.bf16.mxu0 0
        %924 = vmatpush1.bf16.xpose.msra.mxu0 0
        %925 = vmatprep.subr.bf16.mxu0 0
        %926 = vmatpush1.bf16.xpose.msra.mxu0 0
        %927 = vmatprep.subr.bf16.mxu0 0
        %928 = vmatpush1.bf16.xpose.msra.mxu0 0
        %929 = vmatprep.subr.bf16.mxu0 0
        %930 = vmatpush1.bf16.xpose.msra.mxu0 0
        %931 = vmatprep.subr.bf16.mxu0 0
        %932 = vmatpush1.bf16.xpose.msra.mxu0 0
        %933 = vmatprep.subr.bf16.mxu0 0
        %934 = vmatpush1.bf16.xpose.msra.mxu0 0
        %935 = vmatprep.subr.bf16.mxu0 0
        %936 = vmatpush1.bf16.xpose.msra.mxu0 0
        %937 = vmatprep.subr.bf16.mxu0 0
        %938 = vmatpush1.bf16.xpose.msra.mxu0 0
        %939 = vmatprep.subr.bf16.mxu0 0
        %940 = vmatpush1.bf16.xpose.msra.mxu0 0
        %941 = vmatprep.subr.bf16.mxu0 0
        %942 = vmatpush1.bf16.xpose.msra.mxu0 0
        %943 = vmatprep.subr.bf16.mxu0 0
        %944 = vmatpush1.bf16.xpose.msra.mxu0 0
        %945 = vmatprep.subr.bf16.mxu0 0
        %946 = vmatpush1.bf16.xpose.msra.mxu0 0
        %947 = vmatprep.subr.bf16.mxu0 0
        %948 = vmatpush1.bf16.xpose.msra.mxu0 0
        %949 = vmatprep.subr.bf16.mxu0 0
        %950 = vmatpush1.bf16.xpose.msra.mxu0 0
        %951 = vmatprep.subr.bf16.mxu0 0
        %952 = vmatpush1.bf16.xpose.msra.mxu0 0
        %953 = vmatprep.mubr.bf16.mxu0 0
        %954 = vmatmul.mubr.bf16.gmra.mrb[0].mxu0 %v916
        %v955 = vpop.f32.mrb[0].mxu0
        %v956 = vadd.f32 0.0, %v955
        %v957 = vpop.f32.mrb[0].mxu0
        %v958 = vpop.f32.mrb[0].mxu0
        %v959 = vpop.f32.mrb[0].mxu0
        %960 = vdwg.mxu0
        %962 = vrot.lane.b32.xlu0 %v910, 96
        %v963 = vpop.permute.xlu0 %962
        %v965 = vsel %vm914, %v910, 0
        %v968 = vsel %vm914, %v963, 0
        %970 = vmatprep.subr.bf16.mxu0 0
        %971 = vmatpush1.bf16.xpose.msra.mxu0 %v968
        %972 = vmatprep.subr.bf16.mxu0 0
        %973 = vmatpush1.bf16.xpose.msra.mxu0 0
        %974 = vmatprep.subr.bf16.mxu0 0
        %975 = vmatpush1.bf16.xpose.msra.mxu0 0
        %976 = vmatprep.subr.bf16.mxu0 0
        %977 = vmatpush1.bf16.xpose.msra.mxu0 0
        %978 = vmatprep.subr.bf16.mxu0 0
        %979 = vmatpush1.bf16.xpose.msra.mxu0 0
        %980 = vmatprep.subr.bf16.mxu0 0
        %981 = vmatpush1.bf16.xpose.msra.mxu0 0
        %982 = vmatprep.subr.bf16.mxu0 0
        %983 = vmatpush1.bf16.xpose.msra.mxu0 0
        %984 = vmatprep.subr.bf16.mxu0 0
        %985 = vmatpush1.bf16.xpose.msra.mxu0 0
        %986 = vmatprep.subr.bf16.mxu0 0
        %987 = vmatpush1.bf16.xpose.msra.mxu0 0
        %988 = vmatprep.subr.bf16.mxu0 0
        %989 = vmatpush1.bf16.xpose.msra.mxu0 0
        %990 = vmatprep.subr.bf16.mxu0 0
        %991 = vmatpush1.bf16.xpose.msra.mxu0 0
        %992 = vmatprep.subr.bf16.mxu0 0
        %993 = vmatpush1.bf16.xpose.msra.mxu0 0
        %994 = vmatprep.subr.bf16.mxu0 0
        %995 = vmatpush1.bf16.xpose.msra.mxu0 0
        %996 = vmatprep.subr.bf16.mxu0 0
        %997 = vmatpush1.bf16.xpose.msra.mxu0 0
        %998 = vmatprep.subr.bf16.mxu0 0
        %999 = vmatpush1.bf16.xpose.msra.mxu0 0
        %1000 = vmatprep.subr.bf16.mxu0 0
        %1001 = vmatpush1.bf16.xpose.msra.mxu0 0
        %1002 = vmatprep.mubr.bf16.mxu0 0
        %1003 = vmatmul.mubr.bf16.gmra.mrb[0].mxu0 %v965
        %v1004 = vpop.f32.mrb[0].mxu0
        %v1005 = vadd.f32 0.0, %v1004
        %v1006 = vpop.f32.mrb[0].mxu0
        %v1007 = vpop.f32.mrb[0].mxu0
        %v1008 = vpop.f32.mrb[0].mxu0
        %1009 = vdwg.mxu0
        %v1010 = vmul.f32 %v956, 0.35355338
        %v1011 = vmul.f32 %v1005, 0.35355338
        %v1012 = vadd.f32 %v1010, %v902
        %v1013 = vadd.f32 %v1011, %v906
        %v1014 = vsel %vm914, %v1012, -inf
        %1015 = vmax.xlane.f32.xlu0 %v1014
        %v1016 = vpop.xlane.xlu0 %1015
        %v1017 = vsel %vm914, %v1013, -inf
        %1018 = vmax.xlane.f32.xlu0 %v1017
        %v1019 = vpop.xlane.xlu0 %1018
        %v1020 = vsub.f32 %v1012, %v1016
        %v1021 = vsub.f32 %v1013, %v1019
        %v1022 = vmul.f32 %v1020, 1.442695
        %v1023 = vpow.pop %v1022
        %v1024 = vmul.f32 %v1021, 1.442695
        %v1025 = vpow.pop %v1024
        %v1026 = vsel %vm914, %v1023, 0.0
        %1027 = vadd.xlane.f32.xlu0 %v1026
        %v1028 = vpop.xlane.xlu0 %1027
        %v1029 = vsel %vm914, %v1025, 0.0
        %1030 = vadd.xlane.f32.xlu0 %v1029
        %v1031 = vpop.xlane.xlu0 %1030
        %v1032 = vrcp.pop %v1028
        %v1033 = vrcp.pop %v1031
        %v1034 = vmul.f32 %v1023, %v1032
        %v1035 = vmul.f32 %v1025, %v1033
        %v1036 = vpack.c.bf16 %v1034, %v1034
        %v1037 = vpack.c.bf16 %v1035, %v1035
        %1038 = vrot.lane.b32.xlu0 %v909, 64
        %v1039 = vpop.permute.xlu0 %1038
        %v1041 = vsel %vm914, %v1036, 0
        %vm1043 = vcmask 1043456
        %v1045 = vsel %vm1043, %v1039, 0
        %1047 = vmatprep.subr.bf16.mxu0 0
        %1048 = vmatpush1.bf16.msra.mxu0 %v1045
        %1049 = vmatprep.subr.bf16.mxu0 0
        %1050 = vmatpush1.bf16.msra.mxu0 0
        %1051 = vmatprep.subr.bf16.mxu0 0
        %1052 = vmatpush1.bf16.msra.mxu0 0
        %1053 = vmatprep.subr.bf16.mxu0 0
        %1054 = vmatpush1.bf16.msra.mxu0 0
        %1055 = vmatprep.subr.bf16.mxu0 0
        %1056 = vmatpush1.bf16.msra.mxu0 0
        %1057 = vmatprep.subr.bf16.mxu0 0
        %1058 = vmatpush1.bf16.msra.mxu0 0
        %1059 = vmatprep.subr.bf16.mxu0 0
        %1060 = vmatpush1.bf16.msra.mxu0 0
        %1061 = vmatprep.subr.bf16.mxu0 0
        %1062 = vmatpush1.bf16.msra.mxu0 0
        %1063 = vmatprep.subr.bf16.mxu0 0
        %1064 = vmatpush1.bf16.msra.mxu0 0
        %1065 = vmatprep.subr.bf16.mxu0 0
        %1066 = vmatpush1.bf16.msra.mxu0 0
        %1067 = vmatprep.subr.bf16.mxu0 0
        %1068 = vmatpush1.bf16.msra.mxu0 0
        %1069 = vmatprep.subr.bf16.mxu0 0
        %1070 = vmatpush1.bf16.msra.mxu0 0
        %1071 = vmatprep.subr.bf16.mxu0 0
        %1072 = vmatpush1.bf16.msra.mxu0 0
        %1073 = vmatprep.subr.bf16.mxu0 0
        %1074 = vmatpush1.bf16.msra.mxu0 0
        %1075 = vmatprep.subr.bf16.mxu0 0
        %1076 = vmatpush1.bf16.msra.mxu0 0
        %1077 = vmatprep.subr.bf16.mxu0 0
        %1078 = vmatpush1.bf16.msra.mxu0 0
        %1079 = vmatprep.mubr.bf16.mxu0 0
        %1080 = vmatmul.mubr.bf16.gmra.mrb[0].mxu0 %v1041
        %v1081 = vpop.f32.mrb[0].mxu0
        %v1082 = vadd.f32 0.0, %v1081
        %v1083 = vpop.f32.mrb[0].mxu0
        %v1084 = vpop.f32.mrb[0].mxu0
        %v1085 = vpop.f32.mrb[0].mxu0
        %1086 = vdwg.mxu0
        %1087 = vrot.lane.b32.xlu0 %v910, 64
        %v1088 = vpop.permute.xlu0 %1087
        %v1090 = vsel %vm914, %v1037, 0
        %v1093 = vsel %vm1043, %v1088, 0
        %1095 = vmatprep.subr.bf16.mxu0 0
        %1096 = vmatpush1.bf16.msra.mxu0 %v1093
        %1097 = vmatprep.subr.bf16.mxu0 0
        %1098 = vmatpush1.bf16.msra.mxu0 0
        %1099 = vmatprep.subr.bf16.mxu0 0
        %1100 = vmatpush1.bf16.msra.mxu0 0
        %1101 = vmatprep.subr.bf16.mxu0 0
        %1102 = vmatpush1.bf16.msra.mxu0 0
        %1103 = vmatprep.subr.bf16.mxu0 0
        %1104 = vmatpush1.bf16.msra.mxu0 0
        %1105 = vmatprep.subr.bf16.mxu0 0
        %1106 = vmatpush1.bf16.msra.mxu0 0
        %1107 = vmatprep.subr.bf16.mxu0 0
        %1108 = vmatpush1.bf16.msra.mxu0 0
        %1109 = vmatprep.subr.bf16.mxu0 0
        %1110 = vmatpush1.bf16.msra.mxu0 0
        %1111 = vmatprep.subr.bf16.mxu0 0
        %1112 = vmatpush1.bf16.msra.mxu0 0
        %1113 = vmatprep.subr.bf16.mxu0 0
        %1114 = vmatpush1.bf16.msra.mxu0 0
        %1115 = vmatprep.subr.bf16.mxu0 0
        %1116 = vmatpush1.bf16.msra.mxu0 0
        %1117 = vmatprep.subr.bf16.mxu0 0
        %1118 = vmatpush1.bf16.msra.mxu0 0
        %1119 = vmatprep.subr.bf16.mxu0 0
        %1120 = vmatpush1.bf16.msra.mxu0 0
        %1121 = vmatprep.subr.bf16.mxu0 0
        %1122 = vmatpush1.bf16.msra.mxu0 0
        %1123 = vmatprep.subr.bf16.mxu0 0
        %1124 = vmatpush1.bf16.msra.mxu0 0
        %1125 = vmatprep.subr.bf16.mxu0 0
        %1126 = vmatpush1.bf16.msra.mxu0 0
        %1127 = vmatprep.mubr.bf16.mxu0 0
        %1128 = vmatmul.mubr.bf16.gmra.mrb[0].mxu0 %v1090
        %v1129 = vpop.f32.mrb[0].mxu0
        %v1130 = vadd.f32 0.0, %v1129
        %v1131 = vpop.f32.mrb[0].mxu0
        %v1132 = vpop.f32.mrb[0].mxu0
        %v1133 = vpop.f32.mrb[0].mxu0
        %1134 = vdwg.mxu0
        %1135 = vrot.lane.b32.xlu0 %v909, 120
        %v1136 = vpop.permute.xlu0 %1135
        %1137 = vrot.lane.b32.xlu0 %v909, 88
        %v1138 = vpop.permute.xlu0 %1137
        %v1140 = vsel %vm914, %v1136, 0
        %v1143 = vsel %vm914, %v1138, 0
        %1145 = vmatprep.subr.bf16.mxu0 0
        %1146 = vmatpush1.bf16.xpose.msra.mxu0 %v1143
        %1147 = vmatprep.subr.bf16.mxu0 0
        %1148 = vmatpush1.bf16.xpose.msra.mxu0 0
        %1149 = vmatprep.subr.bf16.mxu0 0
        %1150 = vmatpush1.bf16.xpose.msra.mxu0 0
        %1151 = vmatprep.subr.bf16.mxu0 0
        %1152 = vmatpush1.bf16.xpose.msra.mxu0 0
        %1153 = vmatprep.subr.bf16.mxu0 0
        %1154 = vmatpush1.bf16.xpose.msra.mxu0 0
        %1155 = vmatprep.subr.bf16.mxu0 0
        %1156 = vmatpush1.bf16.xpose.msra.mxu0 0
        %1157 = vmatprep.subr.bf16.mxu0 0
        %1158 = vmatpush1.bf16.xpose.msra.mxu0 0
        %1159 = vmatprep.subr.bf16.mxu0 0
        %1160 = vmatpush1.bf16.xpose.msra.mxu0 0
        %1161 = vmatprep.subr.bf16.mxu0 0
        %1162 = vmatpush1.bf16.xpose.msra.mxu0 0
        %1163 = vmatprep.subr.bf16.mxu0 0
        %1164 = vmatpush1.bf16.xpose.msra.mxu0 0
        %1165 = vmatprep.subr.bf16.mxu0 0
        %1166 = vmatpush1.bf16.xpose.msra.mxu0 0
        %1167 = vmatprep.subr.bf16.mxu0 0
        %1168 = vmatpush1.bf16.xpose.msra.mxu0 0
        %1169 = vmatprep.subr.bf16.mxu0 0
        %1170 = vmatpush1.bf16.xpose.msra.mxu0 0
        %1171 = vmatprep.subr.bf16.mxu0 0
        %1172 = vmatpush1.bf16.xpose.msra.mxu0 0
        %1173 = vmatprep.subr.bf16.mxu0 0
        %1174 = vmatpush1.bf16.xpose.msra.mxu0 0
        %1175 = vmatprep.subr.bf16.mxu0 0
        %1176 = vmatpush1.bf16.xpose.msra.mxu0 0
        %1177 = vmatprep.mubr.bf16.mxu0 0
        %1178 = vmatmul.mubr.bf16.gmra.mrb[0].mxu0 %v1140
        %v1179 = vpop.f32.mrb[0].mxu0
        %v1180 = vadd.f32 0.0, %v1179
        %v1181 = vpop.f32.mrb[0].mxu0
        %v1182 = vpop.f32.mrb[0].mxu0
        %v1183 = vpop.f32.mrb[0].mxu0
        %1184 = vdwg.mxu0
        %1185 = vrot.lane.b32.xlu0 %v910, 120
        %v1186 = vpop.permute.xlu0 %1185
        %1187 = vrot.lane.b32.xlu0 %v910, 88
        %v1188 = vpop.permute.xlu0 %1187
        %v1190 = vsel %vm914, %v1186, 0
        %v1193 = vsel %vm914, %v1188, 0
        %1195 = vmatprep.subr.bf16.mxu0 0
        %1196 = vmatpush1.bf16.xpose.msra.mxu0 %v1193
        %1197 = vmatprep.subr.bf16.mxu0 0
        %1198 = vmatpush1.bf16.xpose.msra.mxu0 0
        %1199 = vmatprep.subr.bf16.mxu0 0
        %1200 = vmatpush1.bf16.xpose.msra.mxu0 0
        %1201 = vmatprep.subr.bf16.mxu0 0
        %1202 = vmatpush1.bf16.xpose.msra.mxu0 0
        %1203 = vmatprep.subr.bf16.mxu0 0
        %1204 = vmatpush1.bf16.xpose.msra.mxu0 0
        %1205 = vmatprep.subr.bf16.mxu0 0
        %1206 = vmatpush1.bf16.xpose.msra.mxu0 0
        %1207 = vmatprep.subr.bf16.mxu0 0
        %1208 = vmatpush1.bf16.xpose.msra.mxu0 0
        %1209 = vmatprep.subr.bf16.mxu0 0
        %1210 = vmatpush1.bf16.xpose.msra.mxu0 0
        %1211 = vmatprep.subr.bf16.mxu0 0
        %1212 = vmatpush1.bf16.xpose.msra.mxu0 0
        %1213 = vmatprep.subr.bf16.mxu0 0
        %1214 = vmatpush1.bf16.xpose.msra.mxu0 0
        %1215 = vmatprep.subr.bf16.mxu0 0
        %1216 = vmatpush1.bf16.xpose.msra.mxu0 0
        %1217 = vmatprep.subr.bf16.mxu0 0
        %1218 = vmatpush1.bf16.xpose.msra.mxu0 0
        %1219 = vmatprep.subr.bf16.mxu0 0
        %1220 = vmatpush1.bf16.xpose.msra.mxu0 0
        %1221 = vmatprep.subr.bf16.mxu0 0
        %1222 = vmatpush1.bf16.xpose.msra.mxu0 0
        %1223 = vmatprep.subr.bf16.mxu0 0
        %1224 = vmatpush1.bf16.xpose.msra.mxu0 0
        %1225 = vmatprep.subr.bf16.mxu0 0
        %1226 = vmatpush1.bf16.xpose.msra.mxu0 0
        %1227 = vmatprep.mubr.bf16.mxu0 0
        %1228 = vmatmul.mubr.bf16.gmra.mrb[0].mxu0 %v1190
        %v1229 = vpop.f32.mrb[0].mxu0
        %v1230 = vadd.f32 0.0, %v1229
        %v1231 = vpop.f32.mrb[0].mxu0
        %v1232 = vpop.f32.mrb[0].mxu0
        %v1233 = vpop.f32.mrb[0].mxu0
        %1234 = vdwg.mxu0
        %v1235 = vmul.f32 %v1180, 0.35355338
        %v1236 = vmul.f32 %v1230, 0.35355338
        %v1237 = vadd.f32 %v1235, %v902
        %v1238 = vadd.f32 %v1236, %v906
        %v1239 = vsel %vm914, %v1237, -inf
        %1240 = vmax.xlane.f32.xlu0 %v1239
        %v1241 = vpop.xlane.xlu0 %1240
        %v1242 = vsel %vm914, %v1238, -inf
        %1243 = vmax.xlane.f32.xlu0 %v1242
        %v1244 = vpop.xlane.xlu0 %1243
        %v1245 = vsub.f32 %v1237, %v1241
        %v1246 = vsub.f32 %v1238, %v1244
        %v1247 = vmul.f32 %v1245, 1.442695
        %v1248 = vpow.pop %v1247
        %v1249 = vmul.f32 %v1246, 1.442695
        %v1250 = vpow.pop %v1249
        %v1251 = vsel %vm914, %v1248, 0.0
        %1252 = vadd.xlane.f32.xlu0 %v1251
        %v1253 = vpop.xlane.xlu0 %1252
        %v1254 = vsel %vm914, %v1250, 0.0
        %1255 = vadd.xlane.f32.xlu0 %v1254
        %v1256 = vpop.xlane.xlu0 %1255
        %v1257 = vrcp.pop %v1253
        %v1258 = vrcp.pop %v1256
        %v1259 = vmul.f32 %v1248, %v1257
        %v1260 = vmul.f32 %v1250, %v1258
        %v1261 = vpack.c.bf16 %v1259, %v1259
        %v1262 = vpack.c.bf16 %v1260, %v1260
        %1263 = vrot.lane.b32.xlu0 %v909, 56
        %v1264 = vpop.permute.xlu0 %1263
        %v1266 = vsel %vm914, %v1261, 0
        %v1269 = vsel %vm1043, %v1264, 0
        %1271 = vmatprep.subr.bf16.mxu0 0
        %1272 = vmatpush1.bf16.msra.mxu0 %v1269
        %1273 = vmatprep.subr.bf16.mxu0 0
        %1274 = vmatpush1.bf16.msra.mxu0 0
        %1275 = vmatprep.subr.bf16.mxu0 0
        %1276 = vmatpush1.bf16.msra.mxu0 0
        %1277 = vmatprep.subr.bf16.mxu0 0
        %1278 = vmatpush1.bf16.msra.mxu0 0
        %1279 = vmatprep.subr.bf16.mxu0 0
        %1280 = vmatpush1.bf16.msra.mxu0 0
        %1281 = vmatprep.subr.bf16.mxu0 0
        %1282 = vmatpush1.bf16.msra.mxu0 0
        %1283 = vmatprep.subr.bf16.mxu0 0
        %1284 = vmatpush1.bf16.msra.mxu0 0
        %1285 = vmatprep.subr.bf16.mxu0 0
        %1286 = vmatpush1.bf16.msra.mxu0 0
        %1287 = vmatprep.subr.bf16.mxu0 0
        %1288 = vmatpush1.bf16.msra.mxu0 0
        %1289 = vmatprep.subr.bf16.mxu0 0
        %1290 = vmatpush1.bf16.msra.mxu0 0
        %1291 = vmatprep.subr.bf16.mxu0 0
        %1292 = vmatpush1.bf16.msra.mxu0 0
        %1293 = vmatprep.subr.bf16.mxu0 0
        %1294 = vmatpush1.bf16.msra.mxu0 0
        %1295 = vmatprep.subr.bf16.mxu0 0
        %1296 = vmatpush1.bf16.msra.mxu0 0
        %1297 = vmatprep.subr.bf16.mxu0 0
        %1298 = vmatpush1.bf16.msra.mxu0 0
        %1299 = vmatprep.subr.bf16.mxu0 0
        %1300 = vmatpush1.bf16.msra.mxu0 0
        %1301 = vmatprep.subr.bf16.mxu0 0
        %1302 = vmatpush1.bf16.msra.mxu0 0
        %1303 = vmatprep.mubr.bf16.mxu0 0
        %1304 = vmatmul.mubr.bf16.gmra.mrb[0].mxu0 %v1266
        %v1305 = vpop.f32.mrb[0].mxu0
        %v1306 = vadd.f32 0.0, %v1305
        %v1307 = vpop.f32.mrb[0].mxu0
        %v1308 = vpop.f32.mrb[0].mxu0
        %v1309 = vpop.f32.mrb[0].mxu0
        %1310 = vdwg.mxu0
        %1311 = vrot.lane.b32.xlu0 %v910, 56
        %v1312 = vpop.permute.xlu0 %1311
        %v1314 = vsel %vm914, %v1262, 0
        %v1317 = vsel %vm1043, %v1312, 0
        %1319 = vmatprep.subr.bf16.mxu0 0
        %1320 = vmatpush1.bf16.msra.mxu0 %v1317
        %1321 = vmatprep.subr.bf16.mxu0 0
        %1322 = vmatpush1.bf16.msra.mxu0 0
        %1323 = vmatprep.subr.bf16.mxu0 0
        %1324 = vmatpush1.bf16.msra.mxu0 0
        %1325 = vmatprep.subr.bf16.mxu0 0
        %1326 = vmatpush1.bf16.msra.mxu0 0
        %1327 = vmatprep.subr.bf16.mxu0 0
        %1328 = vmatpush1.bf16.msra.mxu0 0
        %1329 = vmatprep.subr.bf16.mxu0 0
        %1330 = vmatpush1.bf16.msra.mxu0 0
        %1331 = vmatprep.subr.bf16.mxu0 0
        %1332 = vmatpush1.bf16.msra.mxu0 0
        %1333 = vmatprep.subr.bf16.mxu0 0
        %1334 = vmatpush1.bf16.msra.mxu0 0
        %1335 = vmatprep.subr.bf16.mxu0 0
        %1336 = vmatpush1.bf16.msra.mxu0 0
        %1337 = vmatprep.subr.bf16.mxu0 0
        %1338 = vmatpush1.bf16.msra.mxu0 0
        %1339 = vmatprep.subr.bf16.mxu0 0
        %1340 = vmatpush1.bf16.msra.mxu0 0
        %1341 = vmatprep.subr.bf16.mxu0 0
        %1342 = vmatpush1.bf16.msra.mxu0 0
        %1343 = vmatprep.subr.bf16.mxu0 0
        %1344 = vmatpush1.bf16.msra.mxu0 0
        %1345 = vmatprep.subr.bf16.mxu0 0
        %1346 = vmatpush1.bf16.msra.mxu0 0
        %1347 = vmatprep.subr.bf16.mxu0 0
        %1348 = vmatpush1.bf16.msra.mxu0 0
        %1349 = vmatprep.subr.bf16.mxu0 0
        %1350 = vmatpush1.bf16.msra.mxu0 0
        %1351 = vmatprep.mubr.bf16.mxu0 0
        %1352 = vmatmul.mubr.bf16.gmra.mrb[0].mxu0 %v1314
        %v1353 = vpop.f32.mrb[0].mxu0
        %v1354 = vadd.f32 0.0, %v1353
        %v1355 = vpop.f32.mrb[0].mxu0
        %v1356 = vpop.f32.mrb[0].mxu0
        %v1357 = vpop.f32.mrb[0].mxu0
        %1358 = vdwg.mxu0
        %1359 = vrot.lane.b32.xlu0 %v909, 112
        %v1360 = vpop.permute.xlu0 %1359
        %1361 = vrot.lane.b32.xlu0 %v909, 80
        %v1362 = vpop.permute.xlu0 %1361
        %v1364 = vsel %vm914, %v1360, 0
        %v1367 = vsel %vm914, %v1362, 0
        %1369 = vmatprep.subr.bf16.mxu0 0
        %1370 = vmatpush1.bf16.xpose.msra.mxu0 %v1367
        %1371 = vmatprep.subr.bf16.mxu0 0
        %1372 = vmatpush1.bf16.xpose.msra.mxu0 0
        %1373 = vmatprep.subr.bf16.mxu0 0
        %1374 = vmatpush1.bf16.xpose.msra.mxu0 0
        %1375 = vmatprep.subr.bf16.mxu0 0
        %1376 = vmatpush1.bf16.xpose.msra.mxu0 0
        %1377 = vmatprep.subr.bf16.mxu0 0
        %1378 = vmatpush1.bf16.xpose.msra.mxu0 0
        %1379 = vmatprep.subr.bf16.mxu0 0
        %1380 = vmatpush1.bf16.xpose.msra.mxu0 0
        %1381 = vmatprep.subr.bf16.mxu0 0
        %1382 = vmatpush1.bf16.xpose.msra.mxu0 0
        %1383 = vmatprep.subr.bf16.mxu0 0
        %1384 = vmatpush1.bf16.xpose.msra.mxu0 0
        %1385 = vmatprep.subr.bf16.mxu0 0
        %1386 = vmatpush1.bf16.xpose.msra.mxu0 0
        %1387 = vmatprep.subr.bf16.mxu0 0
        %1388 = vmatpush1.bf16.xpose.msra.mxu0 0
        %1389 = vmatprep.subr.bf16.mxu0 0
        %1390 = vmatpush1.bf16.xpose.msra.mxu0 0
        %1391 = vmatprep.subr.bf16.mxu0 0
        %1392 = vmatpush1.bf16.xpose.msra.mxu0 0
        %1393 = vmatprep.subr.bf16.mxu0 0
        %1394 = vmatpush1.bf16.xpose.msra.mxu0 0
        %1395 = vmatprep.subr.bf16.mxu0 0
        %1396 = vmatpush1.bf16.xpose.msra.mxu0 0
        %1397 = vmatprep.subr.bf16.mxu0 0
        %1398 = vmatpush1.bf16.xpose.msra.mxu0 0
        %1399 = vmatprep.subr.bf16.mxu0 0
        %1400 = vmatpush1.bf16.xpose.msra.mxu0 0
        %1401 = vmatprep.mubr.bf16.mxu0 0
        %1402 = vmatmul.mubr.bf16.gmra.mrb[0].mxu0 %v1364
        %v1403 = vpop.f32.mrb[0].mxu0
        %v1404 = vadd.f32 0.0, %v1403
        %v1405 = vpop.f32.mrb[0].mxu0
        %v1406 = vpop.f32.mrb[0].mxu0
        %v1407 = vpop.f32.mrb[0].mxu0
        %1408 = vdwg.mxu0
        %1409 = vrot.lane.b32.xlu0 %v910, 112
        %v1410 = vpop.permute.xlu0 %1409
        %1411 = vrot.lane.b32.xlu0 %v910, 80
        %v1412 = vpop.permute.xlu0 %1411
        %v1414 = vsel %vm914, %v1410, 0
        %v1417 = vsel %vm914, %v1412, 0
        %1419 = vmatprep.subr.bf16.mxu0 0
        %1420 = vmatpush1.bf16.xpose.msra.mxu0 %v1417
        %1421 = vmatprep.subr.bf16.mxu0 0
        %1422 = vmatpush1.bf16.xpose.msra.mxu0 0
        %1423 = vmatprep.subr.bf16.mxu0 0
        %1424 = vmatpush1.bf16.xpose.msra.mxu0 0
        %1425 = vmatprep.subr.bf16.mxu0 0
        %1426 = vmatpush1.bf16.xpose.msra.mxu0 0
        %1427 = vmatprep.subr.bf16.mxu0 0
        %1428 = vmatpush1.bf16.xpose.msra.mxu0 0
        %1429 = vmatprep.subr.bf16.mxu0 0
        %1430 = vmatpush1.bf16.xpose.msra.mxu0 0
        %1431 = vmatprep.subr.bf16.mxu0 0
        %1432 = vmatpush1.bf16.xpose.msra.mxu0 0
        %1433 = vmatprep.subr.bf16.mxu0 0
        %1434 = vmatpush1.bf16.xpose.msra.mxu0 0
        %1435 = vmatprep.subr.bf16.mxu0 0
        %1436 = vmatpush1.bf16.xpose.msra.mxu0 0
        %1437 = vmatprep.subr.bf16.mxu0 0
        %1438 = vmatpush1.bf16.xpose.msra.mxu0 0
        %1439 = vmatprep.subr.bf16.mxu0 0
        %1440 = vmatpush1.bf16.xpose.msra.mxu0 0
        %1441 = vmatprep.subr.bf16.mxu0 0
        %1442 = vmatpush1.bf16.xpose.msra.mxu0 0
        %1443 = vmatprep.subr.bf16.mxu0 0
        %1444 = vmatpush1.bf16.xpose.msra.mxu0 0
        %1445 = vmatprep.subr.bf16.mxu0 0
        %1446 = vmatpush1.bf16.xpose.msra.mxu0 0
        %1447 = vmatprep.subr.bf16.mxu0 0
        %1448 = vmatpush1.bf16.xpose.msra.mxu0 0
        %1449 = vmatprep.subr.bf16.mxu0 0
        %1450 = vmatpush1.bf16.xpose.msra.mxu0 0
        %1451 = vmatprep.mubr.bf16.mxu0 0
        %1452 = vmatmul.mubr.bf16.gmra.mrb[0].mxu0 %v1414
        %v1453 = vpop.f32.mrb[0].mxu0
        %v1454 = vadd.f32 0.0, %v1453
        %v1455 = vpop.f32.mrb[0].mxu0
        %v1456 = vpop.f32.mrb[0].mxu0
        %v1457 = vpop.f32.mrb[0].mxu0
        %1458 = vdwg.mxu0
        %v1459 = vmul.f32 %v1404, 0.35355338
        %v1460 = vmul.f32 %v1454, 0.35355338
        %v1461 = vadd.f32 %v1459, %v902
        %v1462 = vadd.f32 %v1460, %v906
        %v1463 = vsel %vm914, %v1461, -inf
        %1464 = vmax.xlane.f32.xlu0 %v1463
        %v1465 = vpop.xlane.xlu0 %1464
        %v1466 = vsel %vm914, %v1462, -inf
        %1467 = vmax.xlane.f32.xlu0 %v1466
        %v1468 = vpop.xlane.xlu0 %1467
        %v1469 = vsub.f32 %v1461, %v1465
        %v1470 = vsub.f32 %v1462, %v1468
        %v1471 = vmul.f32 %v1469, 1.442695
        %v1472 = vpow.pop %v1471
        %v1473 = vmul.f32 %v1470, 1.442695
        %v1474 = vpow.pop %v1473
        %v1475 = vsel %vm914, %v1472, 0.0
        %1476 = vadd.xlane.f32.xlu0 %v1475
        %v1477 = vpop.xlane.xlu0 %1476
        %v1478 = vsel %vm914, %v1474, 0.0
        %1479 = vadd.xlane.f32.xlu0 %v1478
        %v1480 = vpop.xlane.xlu0 %1479
        %v1481 = vrcp.pop %v1477
        %v1482 = vrcp.pop %v1480
        %v1483 = vmul.f32 %v1472, %v1481
        %v1484 = vmul.f32 %v1474, %v1482
        %v1485 = vpack.c.bf16 %v1483, %v1483
        %v1486 = vpack.c.bf16 %v1484, %v1484
        %1487 = vrot.lane.b32.xlu0 %v909, 48
        %v1488 = vpop.permute.xlu0 %1487
        %v1490 = vsel %vm914, %v1485, 0
        %v1493 = vsel %vm1043, %v1488, 0
        %1495 = vmatprep.subr.bf16.mxu0 0
        %1496 = vmatpush1.bf16.msra.mxu0 %v1493
        %1497 = vmatprep.subr.bf16.mxu0 0
        %1498 = vmatpush1.bf16.msra.mxu0 0
        %1499 = vmatprep.subr.bf16.mxu0 0
        %1500 = vmatpush1.bf16.msra.mxu0 0
        %1501 = vmatprep.subr.bf16.mxu0 0
        %1502 = vmatpush1.bf16.msra.mxu0 0
        %1503 = vmatprep.subr.bf16.mxu0 0
        %1504 = vmatpush1.bf16.msra.mxu0 0
        %1505 = vmatprep.subr.bf16.mxu0 0
        %1506 = vmatpush1.bf16.msra.mxu0 0
        %1507 = vmatprep.subr.bf16.mxu0 0
        %1508 = vmatpush1.bf16.msra.mxu0 0
        %1509 = vmatprep.subr.bf16.mxu0 0
        %1510 = vmatpush1.bf16.msra.mxu0 0
        %1511 = vmatprep.subr.bf16.mxu0 0
        %1512 = vmatpush1.bf16.msra.mxu0 0
        %1513 = vmatprep.subr.bf16.mxu0 0
        %1514 = vmatpush1.bf16.msra.mxu0 0
        %1515 = vmatprep.subr.bf16.mxu0 0
        %1516 = vmatpush1.bf16.msra.mxu0 0
        %1517 = vmatprep.subr.bf16.mxu0 0
        %1518 = vmatpush1.bf16.msra.mxu0 0
        %1519 = vmatprep.subr.bf16.mxu0 0
        %1520 = vmatpush1.bf16.msra.mxu0 0
        %1521 = vmatprep.subr.bf16.mxu0 0
        %1522 = vmatpush1.bf16.msra.mxu0 0
        %1523 = vmatprep.subr.bf16.mxu0 0
        %1524 = vmatpush1.bf16.msra.mxu0 0
        %1525 = vmatprep.subr.bf16.mxu0 0
        %1526 = vmatpush1.bf16.msra.mxu0 0
        %1527 = vmatprep.mubr.bf16.mxu0 0
        %1528 = vmatmul.mubr.bf16.gmra.mrb[0].mxu0 %v1490
        %v1529 = vpop.f32.mrb[0].mxu0
        %v1530 = vadd.f32 0.0, %v1529
        %v1531 = vpop.f32.mrb[0].mxu0
        %v1532 = vpop.f32.mrb[0].mxu0
        %v1533 = vpop.f32.mrb[0].mxu0
        %1534 = vdwg.mxu0
        %1535 = vrot.lane.b32.xlu0 %v910, 48
        %v1536 = vpop.permute.xlu0 %1535
        %v1538 = vsel %vm914, %v1486, 0
        %v1541 = vsel %vm1043, %v1536, 0
        %1543 = vmatprep.subr.bf16.mxu0 0
        %1544 = vmatpush1.bf16.msra.mxu0 %v1541
        %1545 = vmatprep.subr.bf16.mxu0 0
        %1546 = vmatpush1.bf16.msra.mxu0 0
        %1547 = vmatprep.subr.bf16.mxu0 0
        %1548 = vmatpush1.bf16.msra.mxu0 0
        %1549 = vmatprep.subr.bf16.mxu0 0
        %1550 = vmatpush1.bf16.msra.mxu0 0
        %1551 = vmatprep.subr.bf16.mxu0 0
        %1552 = vmatpush1.bf16.msra.mxu0 0
        %1553 = vmatprep.subr.bf16.mxu0 0
        %1554 = vmatpush1.bf16.msra.mxu0 0
        %1555 = vmatprep.subr.bf16.mxu0 0
        %1556 = vmatpush1.bf16.msra.mxu0 0
        %1557 = vmatprep.subr.bf16.mxu0 0
        %1558 = vmatpush1.bf16.msra.mxu0 0
        %1559 = vmatprep.subr.bf16.mxu0 0
        %1560 = vmatpush1.bf16.msra.mxu0 0
        %1561 = vmatprep.subr.bf16.mxu0 0
        %1562 = vmatpush1.bf16.msra.mxu0 0
        %1563 = vmatprep.subr.bf16.mxu0 0
        %1564 = vmatpush1.bf16.msra.mxu0 0
        %1565 = vmatprep.subr.bf16.mxu0 0
        %1566 = vmatpush1.bf16.msra.mxu0 0
        %1567 = vmatprep.subr.bf16.mxu0 0
        %1568 = vmatpush1.bf16.msra.mxu0 0
        %1569 = vmatprep.subr.bf16.mxu0 0
        %1570 = vmatpush1.bf16.msra.mxu0 0
        %1571 = vmatprep.subr.bf16.mxu0 0
        %1572 = vmatpush1.bf16.msra.mxu0 0
        %1573 = vmatprep.subr.bf16.mxu0 0
        %1574 = vmatpush1.bf16.msra.mxu0 0
        %1575 = vmatprep.mubr.bf16.mxu0 0
        %1576 = vmatmul.mubr.bf16.gmra.mrb[0].mxu0 %v1538
        %v1577 = vpop.f32.mrb[0].mxu0
        %v1578 = vadd.f32 0.0, %v1577
        %v1579 = vpop.f32.mrb[0].mxu0
        %v1580 = vpop.f32.mrb[0].mxu0
        %v1581 = vpop.f32.mrb[0].mxu0
        %1582 = vdwg.mxu0
        %1583 = vrot.lane.b32.xlu0 %v909, 104
        %v1584 = vpop.permute.xlu0 %1583
        %1585 = vrot.lane.b32.xlu0 %v909, 72
        %v1586 = vpop.permute.xlu0 %1585
        %v1588 = vsel %vm914, %v1584, 0
        %v1591 = vsel %vm914, %v1586, 0
        %1593 = vmatprep.subr.bf16.mxu0 0
        %1594 = vmatpush1.bf16.xpose.msra.mxu0 %v1591
        %1595 = vmatprep.subr.bf16.mxu0 0
        %1596 = vmatpush1.bf16.xpose.msra.mxu0 0
        %1597 = vmatprep.subr.bf16.mxu0 0
        %1598 = vmatpush1.bf16.xpose.msra.mxu0 0
        %1599 = vmatprep.subr.bf16.mxu0 0
        %1600 = vmatpush1.bf16.xpose.msra.mxu0 0
        %1601 = vmatprep.subr.bf16.mxu0 0
        %1602 = vmatpush1.bf16.xpose.msra.mxu0 0
        %1603 = vmatprep.subr.bf16.mxu0 0
        %1604 = vmatpush1.bf16.xpose.msra.mxu0 0
        %1605 = vmatprep.subr.bf16.mxu0 0
        %1606 = vmatpush1.bf16.xpose.msra.mxu0 0
        %1607 = vmatprep.subr.bf16.mxu0 0
        %1608 = vmatpush1.bf16.xpose.msra.mxu0 0
        %1609 = vmatprep.subr.bf16.mxu0 0
        %1610 = vmatpush1.bf16.xpose.msra.mxu0 0
        %1611 = vmatprep.subr.bf16.mxu0 0
        %1612 = vmatpush1.bf16.xpose.msra.mxu0 0
        %1613 = vmatprep.subr.bf16.mxu0 0
        %1614 = vmatpush1.bf16.xpose.msra.mxu0 0
        %1615 = vmatprep.subr.bf16.mxu0 0
        %1616 = vmatpush1.bf16.xpose.msra.mxu0 0
        %1617 = vmatprep.subr.bf16.mxu0 0
        %1618 = vmatpush1.bf16.xpose.msra.mxu0 0
        %1619 = vmatprep.subr.bf16.mxu0 0
        %1620 = vmatpush1.bf16.xpose.msra.mxu0 0
        %1621 = vmatprep.subr.bf16.mxu0 0
        %1622 = vmatpush1.bf16.xpose.msra.mxu0 0
        %1623 = vmatprep.subr.bf16.mxu0 0
        %1624 = vmatpush1.bf16.xpose.msra.mxu0 0
        %1625 = vmatprep.mubr.bf16.mxu0 0
        %1626 = vmatmul.mubr.bf16.gmra.mrb[0].mxu0 %v1588
        %v1627 = vpop.f32.mrb[0].mxu0
        %v1628 = vadd.f32 0.0, %v1627
        %v1629 = vpop.f32.mrb[0].mxu0
        %v1630 = vpop.f32.mrb[0].mxu0
        %v1631 = vpop.f32.mrb[0].mxu0
        %1632 = vdwg.mxu0
        %1633 = vrot.lane.b32.xlu0 %v910, 104
        %v1634 = vpop.permute.xlu0 %1633
        %1635 = vrot.lane.b32.xlu0 %v910, 72
        %v1636 = vpop.permute.xlu0 %1635
        %v1638 = vsel %vm914, %v1634, 0
        %v1641 = vsel %vm914, %v1636, 0
        %1643 = vmatprep.subr.bf16.mxu0 0
        %1644 = vmatpush1.bf16.xpose.msra.mxu0 %v1641
        %1645 = vmatprep.subr.bf16.mxu0 0
        %1646 = vmatpush1.bf16.xpose.msra.mxu0 0
        %1647 = vmatprep.subr.bf16.mxu0 0
        %1648 = vmatpush1.bf16.xpose.msra.mxu0 0
        %1649 = vmatprep.subr.bf16.mxu0 0
        %1650 = vmatpush1.bf16.xpose.msra.mxu0 0
        %1651 = vmatprep.subr.bf16.mxu0 0
        %1652 = vmatpush1.bf16.xpose.msra.mxu0 0
        %1653 = vmatprep.subr.bf16.mxu0 0
        %1654 = vmatpush1.bf16.xpose.msra.mxu0 0
        %1655 = vmatprep.subr.bf16.mxu0 0
        %1656 = vmatpush1.bf16.xpose.msra.mxu0 0
        %1657 = vmatprep.subr.bf16.mxu0 0
        %1658 = vmatpush1.bf16.xpose.msra.mxu0 0
        %1659 = vmatprep.subr.bf16.mxu0 0
        %1660 = vmatpush1.bf16.xpose.msra.mxu0 0
        %1661 = vmatprep.subr.bf16.mxu0 0
        %1662 = vmatpush1.bf16.xpose.msra.mxu0 0
        %1663 = vmatprep.subr.bf16.mxu0 0
        %1664 = vmatpush1.bf16.xpose.msra.mxu0 0
        %1665 = vmatprep.subr.bf16.mxu0 0
        %1666 = vmatpush1.bf16.xpose.msra.mxu0 0
        %1667 = vmatprep.subr.bf16.mxu0 0
        %1668 = vmatpush1.bf16.xpose.msra.mxu0 0
        %1669 = vmatprep.subr.bf16.mxu0 0
        %1670 = vmatpush1.bf16.xpose.msra.mxu0 0
        %1671 = vmatprep.subr.bf16.mxu0 0
        %1672 = vmatpush1.bf16.xpose.msra.mxu0 0
        %1673 = vmatprep.subr.bf16.mxu0 0
        %1674 = vmatpush1.bf16.xpose.msra.mxu0 0
        %1675 = vmatprep.mubr.bf16.mxu0 0
        %1676 = vmatmul.mubr.bf16.gmra.mrb[0].mxu0 %v1638
        %v1677 = vpop.f32.mrb[0].mxu0
        %v1678 = vadd.f32 0.0, %v1677
        %v1679 = vpop.f32.mrb[0].mxu0
        %v1680 = vpop.f32.mrb[0].mxu0
        %v1681 = vpop.f32.mrb[0].mxu0
        %1682 = vdwg.mxu0
        %v1683 = vmul.f32 %v1628, 0.35355338
        %v1684 = vmul.f32 %v1678, 0.35355338
        %v1685 = vadd.f32 %v1683, %v902
        %v1686 = vadd.f32 %v1684, %v906
        %v1687 = vsel %vm914, %v1685, -inf
        %1688 = vmax.xlane.f32.xlu0 %v1687
        %v1689 = vpop.xlane.xlu0 %1688
        %v1690 = vsel %vm914, %v1686, -inf
        %1691 = vmax.xlane.f32.xlu0 %v1690
        %v1692 = vpop.xlane.xlu0 %1691
        %v1693 = vsub.f32 %v1685, %v1689
        %v1694 = vsub.f32 %v1686, %v1692
        %v1695 = vmul.f32 %v1693, 1.442695
        %v1696 = vpow.pop %v1695
        %v1697 = vmul.f32 %v1694, 1.442695
        %v1698 = vpow.pop %v1697
        %v1699 = vsel %vm914, %v1696, 0.0
        %1700 = vadd.xlane.f32.xlu0 %v1699
        %v1701 = vpop.xlane.xlu0 %1700
        %v1702 = vsel %vm914, %v1698, 0.0
        %1703 = vadd.xlane.f32.xlu0 %v1702
        %v1704 = vpop.xlane.xlu0 %1703
        %v1705 = vrcp.pop %v1701
        %v1706 = vrcp.pop %v1704
        %v1707 = vmul.f32 %v1696, %v1705
        %v1708 = vmul.f32 %v1698, %v1706
        %v1709 = vpack.c.bf16 %v1707, %v1707
        %v1710 = vpack.c.bf16 %v1708, %v1708
        %1711 = vrot.lane.b32.xlu0 %v909, 40
        %v1712 = vpop.permute.xlu0 %1711
        %v1714 = vsel %vm914, %v1709, 0
        %v1717 = vsel %vm1043, %v1712, 0
        %1719 = vmatprep.subr.bf16.mxu0 0
        %1720 = vmatpush1.bf16.msra.mxu0 %v1717
        %1721 = vmatprep.subr.bf16.mxu0 0
        %1722 = vmatpush1.bf16.msra.mxu0 0
        %1723 = vmatprep.subr.bf16.mxu0 0
        %1724 = vmatpush1.bf16.msra.mxu0 0
        %1725 = vmatprep.subr.bf16.mxu0 0
        %1726 = vmatpush1.bf16.msra.mxu0 0
        %1727 = vmatprep.subr.bf16.mxu0 0
        %1728 = vmatpush1.bf16.msra.mxu0 0
        %1729 = vmatprep.subr.bf16.mxu0 0
        %1730 = vmatpush1.bf16.msra.mxu0 0
        %1731 = vmatprep.subr.bf16.mxu0 0
        %1732 = vmatpush1.bf16.msra.mxu0 0
        %1733 = vmatprep.subr.bf16.mxu0 0
        %1734 = vmatpush1.bf16.msra.mxu0 0
        %1735 = vmatprep.subr.bf16.mxu0 0
        %1736 = vmatpush1.bf16.msra.mxu0 0
        %1737 = vmatprep.subr.bf16.mxu0 0
        %1738 = vmatpush1.bf16.msra.mxu0 0
        %1739 = vmatprep.subr.bf16.mxu0 0
        %1740 = vmatpush1.bf16.msra.mxu0 0
        %1741 = vmatprep.subr.bf16.mxu0 0
        %1742 = vmatpush1.bf16.msra.mxu0 0
        %1743 = vmatprep.subr.bf16.mxu0 0
        %1744 = vmatpush1.bf16.msra.mxu0 0
        %1745 = vmatprep.subr.bf16.mxu0 0
        %1746 = vmatpush1.bf16.msra.mxu0 0
        %1747 = vmatprep.subr.bf16.mxu0 0
        %1748 = vmatpush1.bf16.msra.mxu0 0
        %1749 = vmatprep.subr.bf16.mxu0 0
        %1750 = vmatpush1.bf16.msra.mxu0 0
        %1751 = vmatprep.mubr.bf16.mxu0 0
        %1752 = vmatmul.mubr.bf16.gmra.mrb[0].mxu0 %v1714
        %v1753 = vpop.f32.mrb[0].mxu0
        %v1754 = vadd.f32 0.0, %v1753
        %v1755 = vpop.f32.mrb[0].mxu0
        %v1756 = vpop.f32.mrb[0].mxu0
        %v1757 = vpop.f32.mrb[0].mxu0
        %1758 = vdwg.mxu0
        %1759 = vrot.lane.b32.xlu0 %v910, 40
        %v1760 = vpop.permute.xlu0 %1759
        %v1762 = vsel %vm914, %v1710, 0
        %v1765 = vsel %vm1043, %v1760, 0
        %1767 = vmatprep.subr.bf16.mxu0 0
        %1768 = vmatpush1.bf16.msra.mxu0 %v1765
        %1769 = vmatprep.subr.bf16.mxu0 0
        %1770 = vmatpush1.bf16.msra.mxu0 0
        %1771 = vmatprep.subr.bf16.mxu0 0
        %1772 = vmatpush1.bf16.msra.mxu0 0
        %1773 = vmatprep.subr.bf16.mxu0 0
        %1774 = vmatpush1.bf16.msra.mxu0 0
        %1775 = vmatprep.subr.bf16.mxu0 0
        %1776 = vmatpush1.bf16.msra.mxu0 0
        %1777 = vmatprep.subr.bf16.mxu0 0
        %1778 = vmatpush1.bf16.msra.mxu0 0
        %1779 = vmatprep.subr.bf16.mxu0 0
        %1780 = vmatpush1.bf16.msra.mxu0 0
        %1781 = vmatprep.subr.bf16.mxu0 0
        %1782 = vmatpush1.bf16.msra.mxu0 0
        %1783 = vmatprep.subr.bf16.mxu0 0
        %1784 = vmatpush1.bf16.msra.mxu0 0
        %1785 = vmatprep.subr.bf16.mxu0 0
        %1786 = vmatpush1.bf16.msra.mxu0 0
        %1787 = vmatprep.subr.bf16.mxu0 0
        %1788 = vmatpush1.bf16.msra.mxu0 0
        %1789 = vmatprep.subr.bf16.mxu0 0
        %1790 = vmatpush1.bf16.msra.mxu0 0
        %1791 = vmatprep.subr.bf16.mxu0 0
        %1792 = vmatpush1.bf16.msra.mxu0 0
        %1793 = vmatprep.subr.bf16.mxu0 0
        %1794 = vmatpush1.bf16.msra.mxu0 0
        %1795 = vmatprep.subr.bf16.mxu0 0
        %1796 = vmatpush1.bf16.msra.mxu0 0
        %1797 = vmatprep.subr.bf16.mxu0 0
        %1798 = vmatpush1.bf16.msra.mxu0 0
        %1799 = vmatprep.mubr.bf16.mxu0 0
        %1800 = vmatmul.mubr.bf16.gmra.mrb[0].mxu0 %v1762
        %v1801 = vpop.f32.mrb[0].mxu0
        %v1802 = vadd.f32 0.0, %v1801
        %v1803 = vpop.f32.mrb[0].mxu0
        %v1804 = vpop.f32.mrb[0].mxu0
        %v1805 = vpop.f32.mrb[0].mxu0
        %1806 = vdwg.mxu0
        %1809 = vrot.lane.b32.xlu0 %v1306, 8
        %v1810 = vpop.permute.xlu0 %1809
        %1811 = vrot.lane.b32.xlu0 %v1354, 8
        %v1812 = vpop.permute.xlu0 %1811
        %1817 = vrot.lane.b32.xlu0 %v1530, 16
        %v1818 = vpop.permute.xlu0 %1817
        %1819 = vrot.lane.b32.xlu0 %v1578, 16
        %v1820 = vpop.permute.xlu0 %1819
        %1825 = vrot.lane.b32.xlu0 %v1754, 24
        %v1826 = vpop.permute.xlu0 %1825
        %1827 = vrot.lane.b32.xlu0 %v1802, 24
        %v1828 = vpop.permute.xlu0 %1827
        %v1831 = vsel %vm914, %v1082, %v1810
        %v1832 = vsel %vm914, %v1130, %v1812
        %vm1833 = vcmask 130048
        %v1834 = vsel %vm1833, %v1831, %v1818
        %v1835 = vsel %vm1833, %v1832, %v1820
        %vm1836 = vcmask 195584
        %v1837 = vsel %vm1836, %v1834, %v1826
        %v1838 = vsel %vm1836, %v1835, %v1828
        %v1839 = vpack.c.bf16 %v1838, %v1837
        %v1840 = vld [vmem:[%s782] sm:$0xf]
        %v1841 = vld [vmem:[%s782 + $0x4] sm:$0xf]
        %v1842 = vld [vmem:[%s782 + $0x8] sm:$0xf]
        %v1843 = vld [vmem:[%s782 + $0xc] sm:$0xf]
        %v1844 = vld [vmem:[%s785] sm:$0x1]
        %v1846 = vlaneseq
        %v1847 = vshrl.u32 %v1846, 7
        %v1848 = vsub.s32 0, %v1847
        %v1849 = vrot.slane %v1844, %v1848
        %v1855 = vunpack.c.l.b16 %v1840
        %v1856 = vunpack.c.l.b16 %v1841
        %v1857 = vunpack.c.l.b16 %v1842
        %v1858 = vunpack.c.l.b16 %v1843
        %v1859 = vpack.c.b16 %v1856, %v1855
        %v1860 = vpack.c.b16 %v1858, %v1857
        %v1864 = vsel %vm850, %v1839, 0
        %1866 = vmatprep.subr.bf16.mxu0 0
        %1867 = vmatpush1.bf16.msra.mxu0 %v1859
        %1868 = vmatprep.subr.bf16.mxu0 0
        %1869 = vmatpush1.bf16.msra.mxu0 %v1860
        %1870 = vmatprep.subr.bf16.mxu0 0
        %1871 = vmatpush1.bf16.msra.mxu0 0
        %1872 = vmatprep.subr.bf16.mxu0 0
        %1873 = vmatpush1.bf16.msra.mxu0 0
        %1874 = vmatprep.subr.bf16.mxu0 0
        %1875 = vmatpush1.bf16.msra.mxu0 0
        %1876 = vmatprep.subr.bf16.mxu0 0
        %1877 = vmatpush1.bf16.msra.mxu0 0
        %1878 = vmatprep.subr.bf16.mxu0 0
        %1879 = vmatpush1.bf16.msra.mxu0 0
        %1880 = vmatprep.subr.bf16.mxu0 0
        %1881 = vmatpush1.bf16.msra.mxu0 0
        %1882 = vmatprep.subr.bf16.mxu0 0
        %1883 = vmatpush1.bf16.msra.mxu0 0
        %1884 = vmatprep.subr.bf16.mxu0 0
        %1885 = vmatpush1.bf16.msra.mxu0 0
        %1886 = vmatprep.subr.bf16.mxu0 0
        %1887 = vmatpush1.bf16.msra.mxu0 0
        %1888 = vmatprep.subr.bf16.mxu0 0
        %1889 = vmatpush1.bf16.msra.mxu0 0
        %1890 = vmatprep.subr.bf16.mxu0 0
        %1891 = vmatpush1.bf16.msra.mxu0 0
        %1892 = vmatprep.subr.bf16.mxu0 0
        %1893 = vmatpush1.bf16.msra.mxu0 0
        %1894 = vmatprep.subr.bf16.mxu0 0
        %1895 = vmatpush1.bf16.msra.mxu0 0
        %1896 = vmatprep.subr.bf16.mxu0 0
        %1897 = vmatpush1.bf16.msra.mxu0 0
        %1898 = vmatprep.mubr.bf16.mxu0 0
        %1899 = vmatmul.mubr.bf16.gmra.mrb[0].mxu0 %v1864
        %v1900 = vpop.f32.mrb[0].mxu0
        %v1901 = vadd.f32 %v1849, %v1900
        %v1902 = vpop.f32.mrb[0].mxu0
        %v1903 = vpop.f32.mrb[0].mxu0
        %v1904 = vadd.f32 %v1849, %v1903
        %v1905 = vpop.f32.mrb[0].mxu0
        %1906 = vdwg.mxu0
        %v1907 = vadd.f32 %v824, %v1901
        %v1908 = vadd.f32 %v825, %v1904
        %v1909 = vld [vmem:[%s788] sm:$0x1]
        %v1910 = vld [vmem:[%s791] sm:$0x1]
        %v1911 = vsel %vm850, %v1907, 0.0
        %1912 = vadd.xlane.f32.xlu0 %v1911
        %v1913 = vpop.xlane.xlu0 %1912
        %v1914 = vsel %vm850, %v1908, 0.0
        %1915 = vadd.xlane.f32.xlu0 %v1914
        %v1916 = vpop.xlane.xlu0 %1915
        %v1917 = vrcp.pop 32.0
        %v1918 = vmul.f32 %v1913, %v1917
        %v1919 = vmul.f32 %v1916, %v1917
        %v1920 = vsub.f32 %v1907, %v1918
        %v1921 = vsub.f32 %v1908, %v1919
        %v1922 = vmul.f32 %v1920, %v1920
        %v1923 = vmul.f32 %v1921, %v1921
        %v1924 = vsel %vm850, %v1922, 0.0
        %1925 = vadd.xlane.f32.xlu0 %v1924
        %v1926 = vpop.xlane.xlu0 %1925
        %v1927 = vsel %vm850, %v1923, 0.0
        %1928 = vadd.xlane.f32.xlu0 %v1927
        %v1929 = vpop.xlane.xlu0 %1928
        %v1930 = vmul.f32 %v1926, %v1917
        %v1931 = vmul.f32 %v1929, %v1917
        %v1932 = vadd.f32 %v1930, 1e-05
        %v1933 = vadd.f32 %v1931, 1e-05
        %v1934 = vrsqrt.pop %v1932
        %v1935 = vrsqrt.pop %v1933
        %v1936 = vmul.f32 %v1920, %v1934
        %v1937 = vmul.f32 %v1921, %v1935
        %v1939 = vlaneseq
        %v1940 = vshrl.u32 %v1939, 7
        %v1941 = vsub.s32 0, %v1940
        %v1942 = vrot.slane %v1909, %v1941
        %v1944 = vmul.f32 %v1936, %v1942
        %v1945 = vmul.f32 %v1937, %v1942
        %v1947 = vlaneseq
        %v1948 = vshrl.u32 %v1947, 7
        %v1949 = vsub.s32 0, %v1948
        %v1950 = vrot.slane %v1910, %v1949
        %v1952 = vadd.f32 %v1944, %v1950
        %v1953 = vadd.f32 %v1945, %v1950
        %v1954 = vpack.c.bf16 %v1953, %v1952
        %v1955 = vld [vmem:[%s796] sm:$0xf]
        %v1956 = vld [vmem:[%s796 + $0x4] sm:$0xf]
        %v1957 = vld [vmem:[%s796 + $0x8] sm:$0xf]
        %v1958 = vld [vmem:[%s796 + $0xc] sm:$0xf]
        %v1959 = vld [vmem:[%s799] sm:$0x1]
        %v1961 = vlaneseq
        %v1962 = vshrl.u32 %v1961, 7
        %v1963 = vsub.s32 0, %v1962
        %v1964 = vrot.slane %v1959, %v1963
        %v1970 = vunpack.c.l.b16 %v1955
        %v1971 = vunpack.c.l.b16 %v1956
        %v1972 = vunpack.c.l.b16 %v1957
        %v1973 = vunpack.c.l.b16 %v1958
        %v1974 = vpack.c.b16 %v1971, %v1970
        %v1975 = vpack.c.b16 %v1973, %v1972
        %v1979 = vsel %vm850, %v1954, 0
        %1981 = vmatprep.subr.bf16.mxu0 0
        %1982 = vmatpush1.bf16.msra.mxu0 %v1974
        %1983 = vmatprep.subr.bf16.mxu0 0
        %1984 = vmatpush1.bf16.msra.mxu0 %v1975
        %1985 = vmatprep.subr.bf16.mxu0 0
        %1986 = vmatpush1.bf16.msra.mxu0 0
        %1987 = vmatprep.subr.bf16.mxu0 0
        %1988 = vmatpush1.bf16.msra.mxu0 0
        %1989 = vmatprep.subr.bf16.mxu0 0
        %1990 = vmatpush1.bf16.msra.mxu0 0
        %1991 = vmatprep.subr.bf16.mxu0 0
        %1992 = vmatpush1.bf16.msra.mxu0 0
        %1993 = vmatprep.subr.bf16.mxu0 0
        %1994 = vmatpush1.bf16.msra.mxu0 0
        %1995 = vmatprep.subr.bf16.mxu0 0
        %1996 = vmatpush1.bf16.msra.mxu0 0
        %1997 = vmatprep.subr.bf16.mxu0 0
        %1998 = vmatpush1.bf16.msra.mxu0 0
        %1999 = vmatprep.subr.bf16.mxu0 0
        %2000 = vmatpush1.bf16.msra.mxu0 0
        %2001 = vmatprep.subr.bf16.mxu0 0
        %2002 = vmatpush1.bf16.msra.mxu0 0
        %2003 = vmatprep.subr.bf16.mxu0 0
        %2004 = vmatpush1.bf16.msra.mxu0 0
        %2005 = vmatprep.subr.bf16.mxu0 0
        %2006 = vmatpush1.bf16.msra.mxu0 0
        %2007 = vmatprep.subr.bf16.mxu0 0
        %2008 = vmatpush1.bf16.msra.mxu0 0
        %2009 = vmatprep.subr.bf16.mxu0 0
        %2010 = vmatpush1.bf16.msra.mxu0 0
        %2011 = vmatprep.subr.bf16.mxu0 0
        %2012 = vmatpush1.bf16.msra.mxu0 0
        %2013 = vmatprep.mubr.bf16.mxu0 0
        %2014 = vmatmul.mubr.bf16.gmra.mrb[0].mxu0 %v1979
        %v2015 = vpop.f32.mrb[0].mxu0
        %v2016 = vadd.f32 %v1964, %v2015
        %v2017 = vpop.f32.mrb[0].mxu0
        %v2018 = vpop.f32.mrb[0].mxu0
        %v2019 = vadd.f32 %v1964, %v2018
        %v2020 = vpop.f32.mrb[0].mxu0
        %2021 = vdwg.mxu0
        %v2022 = vmax.f32 %v2016, 0.0
        %v2023 = vmax.f32 %v2019, 0.0
        %v2024 = vpack.c.bf16 %v2023, %v2022
        %v2025 = vld [vmem:[%s804] sm:$0xf]
        %v2026 = vld [vmem:[%s804 + $0x4] sm:$0xf]
        %v2027 = vld [vmem:[%s804 + $0x8] sm:$0xf]
        %v2028 = vld [vmem:[%s804 + $0xc] sm:$0xf]
        %v2029 = vld [vmem:[%s804 + $0x10] sm:$0xf]
        %v2030 = vld [vmem:[%s804 + $0x14] sm:$0xf]
        %v2031 = vld [vmem:[%s804 + $0x18] sm:$0xf]
        %v2032 = vld [vmem:[%s804 + $0x1c] sm:$0xf]
        %v2033 = vld [vmem:[%s807] sm:$0x1]
        %v2035 = vlaneseq
        %v2036 = vshrl.u32 %v2035, 7
        %v2037 = vsub.s32 0, %v2036
        %v2038 = vrot.slane %v2033, %v2037
        %v2048 = vunpack.c.l.b16 %v2025
        %v2049 = vunpack.c.l.b16 %v2026
        %v2050 = vunpack.c.l.b16 %v2027
        %v2051 = vunpack.c.l.b16 %v2028
        %v2052 = vunpack.c.l.b16 %v2029
        %v2053 = vunpack.c.l.b16 %v2030
        %v2054 = vunpack.c.l.b16 %v2031
        %v2055 = vunpack.c.l.b16 %v2032
        %v2056 = vpack.c.b16 %v2049, %v2048
        %v2057 = vpack.c.b16 %v2051, %v2050
        %v2058 = vpack.c.b16 %v2053, %v2052
        %v2059 = vpack.c.b16 %v2055, %v2054
        %vm2064 = vcmask 523264
        %v2066 = vsel %vm2064, %v2024, 0
        %2068 = vmatprep.subr.bf16.mxu0 0
        %2069 = vmatpush1.bf16.msra.mxu0 %v2056
        %2070 = vmatprep.subr.bf16.mxu0 0
        %2071 = vmatpush1.bf16.msra.mxu0 %v2057
        %2072 = vmatprep.subr.bf16.mxu0 0
        %2073 = vmatpush1.bf16.msra.mxu0 %v2058
        %2074 = vmatprep.subr.bf16.mxu0 0
        %2075 = vmatpush1.bf16.msra.mxu0 %v2059
        %2076 = vmatprep.subr.bf16.mxu0 0
        %2077 = vmatpush1.bf16.msra.mxu0 0
        %2078 = vmatprep.subr.bf16.mxu0 0
        %2079 = vmatpush1.bf16.msra.mxu0 0
        %2080 = vmatprep.subr.bf16.mxu0 0
        %2081 = vmatpush1.bf16.msra.mxu0 0
        %2082 = vmatprep.subr.bf16.mxu0 0
        %2083 = vmatpush1.bf16.msra.mxu0 0
        %2084 = vmatprep.subr.bf16.mxu0 0
        %2085 = vmatpush1.bf16.msra.mxu0 0
        %2086 = vmatprep.subr.bf16.mxu0 0
        %2087 = vmatpush1.bf16.msra.mxu0 0
        %2088 = vmatprep.subr.bf16.mxu0 0
        %2089 = vmatpush1.bf16.msra.mxu0 0
        %2090 = vmatprep.subr.bf16.mxu0 0
        %2091 = vmatpush1.bf16.msra.mxu0 0
        %2092 = vmatprep.subr.bf16.mxu0 0
        %2093 = vmatpush1.bf16.msra.mxu0 0
        %2094 = vmatprep.subr.bf16.mxu0 0
        %2095 = vmatpush1.bf16.msra.mxu0 0
        %2096 = vmatprep.subr.bf16.mxu0 0
        %2097 = vmatpush1.bf16.msra.mxu0 0
        %2098 = vmatprep.subr.bf16.mxu0 0
        %2099 = vmatpush1.bf16.msra.mxu0 0
        %2100 = vmatprep.mubr.bf16.mxu0 0
        %2101 = vmatmul.mubr.bf16.gmra.mrb[0].mxu0 %v2066
        %v2102 = vpop.f32.mrb[0].mxu0
        %v2103 = vadd.f32 %v2038, %v2102
        %v2104 = vpop.f32.mrb[0].mxu0
        %v2105 = vpop.f32.mrb[0].mxu0
        %v2106 = vadd.f32 %v2038, %v2105
        %v2107 = vpop.f32.mrb[0].mxu0
        %2108 = vdwg.mxu0
        %v2109 = vadd.f32 %v1952, %v2103
        %v2110 = vadd.f32 %v1953, %v2106
        %v2111 = vld [vmem:[%s810] sm:$0x1]
        %v2112 = vld [vmem:[%s813] sm:$0x1]
        %v2113 = vsel %vm850, %v2109, 0.0
        %2114 = vadd.xlane.f32.xlu0 %v2113
        %v2115 = vpop.xlane.xlu0 %2114
        %v2116 = vsel %vm850, %v2110, 0.0
        %2117 = vadd.xlane.f32.xlu0 %v2116
        %v2118 = vpop.xlane.xlu0 %2117
        %v2119 = vmul.f32 %v2115, %v1917
        %v2120 = vmul.f32 %v2118, %v1917
        %v2121 = vsub.f32 %v2109, %v2119
        %v2122 = vsub.f32 %v2110, %v2120
        %v2123 = vmul.f32 %v2121, %v2121
        %v2124 = vmul.f32 %v2122, %v2122
        %v2125 = vsel %vm850, %v2123, 0.0
        %2126 = vadd.xlane.f32.xlu0 %v2125
        %v2127 = vpop.xlane.xlu0 %2126
        %v2128 = vsel %vm850, %v2124, 0.0
        %2129 = vadd.xlane.f32.xlu0 %v2128
        %v2130 = vpop.xlane.xlu0 %2129
        %v2131 = vmul.f32 %v2127, %v1917
        %v2132 = vmul.f32 %v2130, %v1917
        %v2133 = vadd.f32 %v2131, 1e-05
        %v2134 = vadd.f32 %v2132, 1e-05
        %v2135 = vrsqrt.pop %v2133
        %v2136 = vrsqrt.pop %v2134
        %v2137 = vmul.f32 %v2121, %v2135
        %v2138 = vmul.f32 %v2122, %v2136
        %v2140 = vlaneseq
        %v2141 = vshrl.u32 %v2140, 7
        %v2142 = vsub.s32 0, %v2141
        %v2143 = vrot.slane %v2111, %v2142
        %v2145 = vmul.f32 %v2137, %v2143
        %v2146 = vmul.f32 %v2138, %v2143
        %v2148 = vlaneseq
        %v2149 = vshrl.u32 %v2148, 7
        %v2150 = vsub.s32 0, %v2149
        %v2151 = vrot.slane %v2112, %v2150
        %v2153 = vadd.f32 %v2145, %v2151
        %v2154 = vadd.f32 %v2146, %v2151
        %2155 = vst.msk [vmem:[#allocation2] sm:$0xff] %vm850, %v2153
        %2156 = vst.msk [vmem:[#allocation2 + $0x8] sm:$0xff] %vm850, %v2154
        %p2157 = scmp.eq.s32.totalorder %s35, 1
        // Predicated region
        $region105: #{embedding_transformer_forward.1} parent=99 // pred_check
          %p2158 = pneg %p2157
        $region106: #{embedding_transformer_forward.1} parent=99 // pred_check_branch
          %2160 = sbr.rel (%p2158) target = $region108
        $region107: #{embedding_transformer_forward.1} parent=99 // pred_region
          %v2161 = vld [vmem:[%s14] sm:$0x1]
          %v2162 = vld [vmem:[%s15] sm:$0x1]
          %v2163 = vsel %vm850, %v2153, 0.0
          %2164 = vadd.xlane.f32.xlu0 %v2163
          %v2165 = vpop.xlane.xlu0 %2164
          %v2166 = vsel %vm850, %v2154, 0.0
          %2167 = vadd.xlane.f32.xlu0 %v2166
          %v2168 = vpop.xlane.xlu0 %2167
          %v2169 = vmul.f32 %v2165, %v1917
          %v2170 = vmul.f32 %v2168, %v1917
          %v2171 = vsub.f32 %v2153, %v2169
          %v2172 = vsub.f32 %v2154, %v2170
          %v2173 = vmul.f32 %v2171, %v2171
          %v2174 = vmul.f32 %v2172, %v2172
          %v2175 = vsel %vm850, %v2173, 0.0
          %2176 = vadd.xlane.f32.xlu0 %v2175
          %v2177 = vpop.xlane.xlu0 %2176
          %v2178 = vsel %vm850, %v2174, 0.0
          %2179 = vadd.xlane.f32.xlu0 %v2178
          %v2180 = vpop.xlane.xlu0 %2179
          %v2181 = vmul.f32 %v2177, %v1917
          %v2182 = vmul.f32 %v2180, %v1917
          %v2183 = vadd.f32 %v2181, 1e-05
          %v2184 = vadd.f32 %v2182, 1e-05
          %v2185 = vrsqrt.pop %v2183
          %v2186 = vrsqrt.pop %v2184
          %v2187 = vmul.f32 %v2171, %v2185
          %v2188 = vmul.f32 %v2172, %v2186
          %v2190 = vlaneseq
          %v2191 = vshrl.u32 %v2190, 7
          %v2192 = vsub.s32 0, %v2191
          %v2193 = vrot.slane %v2161, %v2192
          %v2195 = vmul.f32 %v2187, %v2193
          %v2196 = vmul.f32 %v2188, %v2193
          %v2198 = vlaneseq
          %v2199 = vshrl.u32 %v2198, 7
          %v2200 = vsub.s32 0, %v2199
          %v2201 = vrot.slane %v2162, %v2200
          %v2203 = vadd.f32 %v2195, %v2201
          %v2204 = vadd.f32 %v2196, %v2201
          %v2205 = vpack.c.bf16 %v2204, %v2203
          %v2206 = vld [vmem:[%s18] sm:$0xf]
          %v2207 = vld [vmem:[%s18 + $0x4] sm:$0xf]
          %v2208 = vld [vmem:[%s18 + $0x8] sm:$0xf]
          %v2209 = vld [vmem:[%s18 + $0xc] sm:$0xf]
          %v2210 = vld [vmem:[%s19] sm:$0x1]
          %v2212 = vlaneseq
          %v2213 = vshrl.u32 %v2212, 7
          %v2214 = vsub.s32 0, %v2213
          %v2215 = vrot.slane %v2210, %v2214
          %v2221 = vunpack.c.l.b16 %v2206
          %v2222 = vunpack.c.l.b16 %v2207
          %v2223 = vunpack.c.l.b16 %v2208
          %v2224 = vunpack.c.l.b16 %v2209
          %v2225 = vpack.c.b16 %v2222, %v2221
          %v2226 = vpack.c.b16 %v2224, %v2223
          %v2230 = vsel %vm850, %v2205, 0
          %2232 = vmatprep.subr.bf16.mxu0 0
          %2233 = vmatpush1.bf16.msra.mxu0 %v2225
          %2234 = vmatprep.subr.bf16.mxu0 0
          %2235 = vmatpush1.bf16.msra.mxu0 %v2226
          %2236 = vmatprep.subr.bf16.mxu0 0
          %2237 = vmatpush1.bf16.msra.mxu0 0
          %2238 = vmatprep.subr.bf16.mxu0 0
          %2239 = vmatpush1.bf16.msra.mxu0 0
          %2240 = vmatprep.subr.bf16.mxu0 0
          %2241 = vmatpush1.bf16.msra.mxu0 0
          %2242 = vmatprep.subr.bf16.mxu0 0
          %2243 = vmatpush1.bf16.msra.mxu0 0
          %2244 = vmatprep.subr.bf16.mxu0 0
          %2245 = vmatpush1.bf16.msra.mxu0 0
          %2246 = vmatprep.subr.bf16.mxu0 0
          %2247 = vmatpush1.bf16.msra.mxu0 0
          %2248 = vmatprep.subr.bf16.mxu0 0
          %2249 = vmatpush1.bf16.msra.mxu0 0
          %2250 = vmatprep.subr.bf16.mxu0 0
          %2251 = vmatpush1.bf16.msra.mxu0 0
          %2252 = vmatprep.subr.bf16.mxu0 0
          %2253 = vmatpush1.bf16.msra.mxu0 0
          %2254 = vmatprep.subr.bf16.mxu0 0
          %2255 = vmatpush1.bf16.msra.mxu0 0
          %2256 = vmatprep.subr.bf16.mxu0 0
          %2257 = vmatpush1.bf16.msra.mxu0 0
          %2258 = vmatprep.subr.bf16.mxu0 0
          %2259 = vmatpush1.bf16.msra.mxu0 0
          %2260 = vmatprep.subr.bf16.mxu0 0
          %2261 = vmatpush1.bf16.msra.mxu0 0
          %2262 = vmatprep.subr.bf16.mxu0 0
          %2263 = vmatpush1.bf16.msra.mxu0 0
          %2264 = vmatprep.mubr.bf16.mxu0 0
          %2265 = vmatmul.mubr.bf16.gmra.mrb[0].mxu0 %v2230
          %v2266 = vpop.f32.mrb[0].mxu0
          %v2267 = vadd.f32 %v2215, %v2266
          %v2268 = vpop.f32.mrb[0].mxu0
          %v2269 = vpop.f32.mrb[0].mxu0
          %v2270 = vadd.f32 %v2215, %v2269
          %v2271 = vpop.f32.mrb[0].mxu0
          %2272 = vdwg.mxu0
          %2273 = vst [vmem:[#allocation5] sm:$0xff] %v2267
          %2274 = vst [vmem:[#allocation5 + $0x8] sm:$0xff] %v2270
          %v2276 = vrot.slane %v2204, 7
          %vm2278 = vcmask 1040384
          %v2279 = vsel %vm2278, %v2203, %v2276
          %v2280 = vpack.c.bf16 %v2279, %v2279
          %v2281 = vld [vmem:[%s16] sm:$0xf]
          %v2282 = vld [vmem:[%s16 + $0x4] sm:$0xf]
          %v2283 = vld [vmem:[%s16 + $0x8] sm:$0xf]
          %v2284 = vld [vmem:[%s16 + $0xc] sm:$0xf]
          %v2285 = vld [vmem:[%s17] sm:$0x1]
          %v2287 = vlaneseq
          %v2288 = vshrl.u32 %v2287, 7
          %v2289 = vsub.s32 0, %v2288
          %v2290 = vrot.slane %v2285, %v2289
          %v2296 = vunpack.c.l.b16 %v2281
          %v2297 = vunpack.c.l.b16 %v2282
          %v2298 = vunpack.c.l.b16 %v2283
          %v2299 = vunpack.c.l.b16 %v2284
          %v2300 = vpack.c.b16 %v2297, %v2296
          %v2301 = vpack.c.b16 %v2299, %v2298
          %v2305 = vsel %vm850, %v2280, 0
          %2307 = vmatprep.subr.bf16.mxu0 0
          %2308 = vmatpush1.bf16.msra.mxu0 %v2300
          %2309 = vmatprep.subr.bf16.mxu0 0
          %2310 = vmatpush1.bf16.msra.mxu0 %v2301
          %2311 = vmatprep.subr.bf16.mxu0 0
          %2312 = vmatpush1.bf16.msra.mxu0 0
          %2313 = vmatprep.subr.bf16.mxu0 0
          %2314 = vmatpush1.bf16.msra.mxu0 0
          %2315 = vmatprep.subr.bf16.mxu0 0
          %2316 = vmatpush1.bf16.msra.mxu0 0
          %2317 = vmatprep.subr.bf16.mxu0 0
          %2318 = vmatpush1.bf16.msra.mxu0 0
          %2319 = vmatprep.subr.bf16.mxu0 0
          %2320 = vmatpush1.bf16.msra.mxu0 0
          %2321 = vmatprep.subr.bf16.mxu0 0
          %2322 = vmatpush1.bf16.msra.mxu0 0
          %2323 = vmatprep.subr.bf16.mxu0 0
          %2324 = vmatpush1.bf16.msra.mxu0 0
          %2325 = vmatprep.subr.bf16.mxu0 0
          %2326 = vmatpush1.bf16.msra.mxu0 0
          %2327 = vmatprep.subr.bf16.mxu0 0
          %2328 = vmatpush1.bf16.msra.mxu0 0
          %2329 = vmatprep.subr.bf16.mxu0 0
          %2330 = vmatpush1.bf16.msra.mxu0 0
          %2331 = vmatprep.subr.bf16.mxu0 0
          %2332 = vmatpush1.bf16.msra.mxu0 0
          %2333 = vmatprep.subr.bf16.mxu0 0
          %2334 = vmatpush1.bf16.msra.mxu0 0
          %2335 = vmatprep.subr.bf16.mxu0 0
          %2336 = vmatpush1.bf16.msra.mxu0 0
          %2337 = vmatprep.subr.bf16.mxu0 0
          %2338 = vmatpush1.bf16.msra.mxu0 0
          %2339 = vmatprep.mubr.bf16.mxu0 0
          %2340 = vmatmul.mubr.bf16.gmra.mrb[0].mxu0 %v2305
          %v2341 = vpop.f32.mrb[0].mxu0
          %v2342 = vadd.f32 %v2290, %v2341
          %v2343 = vpop.f32.mrb[0].mxu0
          %v2344 = vpop.f32.mrb[0].mxu0
          %v2345 = vpop.f32.mrb[0].mxu0
          %2346 = vdwg.mxu0
          %2347 = vst [vmem:[#allocation3] sm:$0x3] %v2342
        $region108: #{embedding_transformer_forward.1} parent=99 // pred_fallthru
          _
        // Predicated region
        $region109: #{embedding_transformer_forward.1} parent=99 // pred_check
          %p2348 = pneg %p528
        $region110: #{embedding_transformer_forward.1} parent=99 // pred_check_branch
          %2350 = sbr.rel (%p2348) target = $region112
        $region111: #{embedding_transformer_forward.1} parent=99 // pred_region
          %s2352 = ssub.s32 32, 32
          %2353 = vsyncadd [#allocation4], %s2352
          %s2355 = sshll.u32 [#allocation3], 4
          %s2356 = int_to_ptr.vmem [resolvable:$true] %s2355
          %2358 = dma.vmem_to_hbm [thread:$0]  %s2356, 32, %s20, [#allocation4]
        $region112: #{embedding_transformer_forward.1} parent=99 // pred_fallthru
          _
        // Predicated region
        $region113: #{embedding_transformer_forward.1} parent=99 // pred_check
          %p2359 = pneg %p549
        $region114: #{embedding_transformer_forward.1} parent=99 // pred_check_branch
          %2361 = sbr.rel (%p2359) target = $region116
        $region115: #{embedding_transformer_forward.1} parent=99 // pred_region
          %s2363 = ssub.s32 256, 256
          %2364 = vsyncadd [#allocation6], %s2363
          %s2365 = sshll.u32 [#allocation5], 4
          %s2366 = int_to_ptr.vmem [resolvable:$true] %s2365
          %2371 = dma.vmem_to_hbm [thread:$0]  %s2366, 256, %s21, [#allocation6], 128, 128, 8
        $region116: #{embedding_transformer_forward.1} parent=99 // pred_fallthru
          _
        // Predicated region
        $region117: #{embedding_transformer_forward.1} parent=99 // pred_check
          %p2372 = pneg %p528
        $region118: #{embedding_transformer_forward.1} parent=99 // pred_check_branch
          %2374 = sbr.rel (%p2372) target = $region120
        $region119: #{embedding_transformer_forward.1} parent=99 // pred_region
          %2375 = dma.done [#allocation4], 32
        $region120: #{embedding_transformer_forward.1} parent=99 // pred_fallthru
          _
        // Predicated region
        $region121: #{embedding_transformer_forward.1} parent=99 // pred_check
          %p2376 = pneg %p549
        $region122: #{embedding_transformer_forward.1} parent=99 // pred_check_branch
          %2378 = sbr.rel (%p2376) target = $region124
        $region123: #{embedding_transformer_forward.1} parent=99 // pred_region
          %2379 = dma.done [#allocation6], 256
        $region124: #{embedding_transformer_forward.1} parent=99 // pred_fallthru
          _
      $region100: #{embedding_transformer_forward.1} parent=5 // pred_fallthru
        _
      %p2380 = scmp.le.s32.totalorder 2, %s30
      // Predicated region
      $region125: #{embedding_transformer_forward.1} parent=5 // pred_check
        %p2381 = pneg %p2380
      $region126: #{embedding_transformer_forward.1} parent=5 // pred_check_branch
        %2383 = sbr.rel (%p2381) target = $region128
      $region127: #{embedding_transformer_forward.1} parent=5 // pred_region
        %s2384 = ssub.s32 %s30, 2
      $region128: #{embedding_transformer_forward.1} parent=5 // pred_fallthru
        _
    $region6: #{embedding_transformer_forward.1} parent=1 // loop_footer
      %s34 = sadd.s32 1, %s30
    $region7: #{embedding_transformer_forward.1} parent=1 // loop_footer_branch
      %29 = sbr.rel target = $region3
    $region8: #{embedding_transformer_forward.1} parent=1 // loop_exit
      _
    %2385 = vsyncpa [#allocation4], 1
    %s2386 = scalar_lea.sflag [#allocation4], 1
    %2387 = vsyncpa %s2386, 1
    %2388 = vsyncpa [#allocation6], 1

</llo_original>
